<compile_context>
chip_gen: v6e
topology: v6e:2x2x1
jax: 0.10.0
libtpu: 0.0.40
codegen_flags: <defaults>
</compile_context>

<pallas_src>
import functools

import jax
import jax.numpy as jnp
from jax.experimental import pallas as pl
from jax.experimental.pallas import tpu as pltpu


def _dwconv_kernel(x_ref, w_ref, b_ref, o_ref, xp_ref, *, ksize, pad, H, W):
    # x_ref : (Bt, H, W, Ct)        unpadded input block (channels on lanes)
    # w_ref : (k*k, Ct)             depthwise taps, channels-last, f32
    # b_ref : (1, Ct)               bias, f32
    # o_ref : (Bt, H, W, Ct)        output block
    # xp_ref: (Bt, H+2p, W+2p, Ct)  VMEM scratch holding the haloed input
    bt = x_ref.shape[0]
    ct = x_ref.shape[-1]
    dt = xp_ref.dtype
    Hp = H + 2 * pad
    Wp = W + 2 * pad

    # In-kernel halo: zero the four thin border strips (cheap VMEM stores),
    # then copy the unpadded block into the interior.  This replaces the
    # host-side jnp.pad and its extra HBM round trip of the whole activation.
    xp_ref[:, 0:pad, :, :] = jnp.zeros((bt, pad, Wp, ct), dt)
    xp_ref[:, Hp - pad:Hp, :, :] = jnp.zeros((bt, pad, Wp, ct), dt)
    xp_ref[:, :, 0:pad, :] = jnp.zeros((bt, Hp, pad, ct), dt)
    xp_ref[:, :, Wp - pad:Wp, :] = jnp.zeros((bt, Hp, pad, ct), dt)
    xp_ref[:, pad:pad + H, pad:pad + W, :] = x_ref[...]

    w = w_ref[...]  # (k*k, Ct) f32
    # Register-resident 9-tap accumulation: init from tap 0, add the remaining
    # shifted taps, store exactly once.  Promotion against the f32 taps keeps
    # the accumulation in f32 regardless of the activation dtype.
    acc = xp_ref[:, 0:H, 0:W, :] * w[0]
    for t in range(1, ksize * ksize):
        kh, kw = divmod(t, ksize)
        acc = acc + xp_ref[:, kh:kh + H, kw:kw + W, :] * w[t]
    acc = acc + b_ref[0]
    o_ref[...] = acc.astype(o_ref.dtype)


def _round_block_bytes(shape, itemsize):
    """Rough VMEM footprint of a block: last two dims rounded to (8, 128)."""
    *lead, s, l = shape
    sr = -(-s // 8) * 8
    lr = -(-l // 128) * 128
    n = 1
    for d in lead:
        n *= d
    return n * sr * lr * itemsize


def dwconv_mulit(x, weight, bias, H, W):
    """Forward of DWConv_Mulit. x: (B, N, C) with N == H*W; returns (B, N, C)."""
    B, N, C = x.shape
    assert N == H * W, (N, H, W)
    Cw, one, k, k2 = weight.shape
    assert Cw == C and one == 1 and k == k2, weight.shape  # depthwise kxk
    pad = k // 2  # stride 1, "same" padding

    # (B, N, C) -> (B, H, W, C): pure relabel, C stays on lanes.  No pad here.
    xs = x.reshape(B, H, W, C)

    # OIHW depthwise weight (C,1,k,k) -> channels-last taps (k*k, C), f32.
    w_taps = jnp.transpose(weight[:, 0, :, :], (1, 2, 0)).reshape(k * k, C)
    w_taps = w_taps.astype(jnp.float32)
    b = bias.reshape(1, C).astype(jnp.float32)

    itemsize = jnp.dtype(x.dtype).itemsize

    # Generation-aware VMEM budget (~96 MiB on v5e/v6e, ~48 MiB on v7x).
    try:
        vmem_cap = int(getattr(pltpu.get_tpu_info(), "vmem_capacity_bytes"))
    except Exception:  # pragma: no cover - conservative fallback (v7x physical)
        vmem_cap = 64 << 20
    vmem_limit = max(int(vmem_cap * 3 // 4), 32 << 20)
    block_budget = vmem_limit - (4 << 20)

    def fits(bt, ct):
        blk = _round_block_bytes((bt, H, W, ct), itemsize)          # in block
        out = _round_block_bytes((bt, H, W, ct), itemsize)          # out block
        scr = _round_block_bytes((bt, H + 2 * pad, W + 2 * pad, ct), itemsize)
        small = _round_block_bytes((k * k, ct), 4) + _round_block_bytes((1, ct), 4)
        # 2x for double-buffered pipelined blocks; scratch is single-buffered.
        return 2 * (blk + out + small) + scr + (1 << 20) <= block_budget

    # Channel tile: largest multiple-of-128 divisor of C that fits the budget
    # (depthwise conv never mixes channels -> C axis is embarrassingly parallel).
    if C % 128 == 0:
        c_cands = [c for c in range(C, 0, -128) if C % c == 0]
    else:
        c_cands = [C]
    c_tile = c_cands[-1]
    for c in c_cands:
        if fits(1, c):
            c_tile = c
            break
    num_c = C // c_tile

    # Batch tile: largest divisor of B that fits, amortizing per-step overhead;
    # keep at least 2 grid steps when possible so v7x's second TensorCore works.
    divs = [d for d in range(1, B + 1) if B % d == 0]
    fitting = [d for d in divs if fits(d, c_tile)] or [1]
    b_tile = max(fitting)
    if b_tile == B and B > 1 and num_c == 1:
        smaller = [d for d in fitting if d < B]
        if smaller:
            b_tile = max(smaller)
    num_b = B // b_tile

    kernel = functools.partial(_dwconv_kernel, ksize=k, pad=pad, H=H, W=W)

    out4d = pl.pallas_call(
        kernel,
        out_shape=jax.ShapeDtypeStruct((B, H, W, C), x.dtype),
        grid_spec=pltpu.PrefetchScalarGridSpec(
            num_scalar_prefetch=0,
            grid=(num_b, num_c),
            in_specs=[
                pl.BlockSpec((b_tile, H, W, c_tile),
                             lambda bi, ci: (bi, 0, 0, ci)),
                pl.BlockSpec((k * k, c_tile), lambda bi, ci: (0, ci)),
                pl.BlockSpec((1, c_tile), lambda bi, ci: (0, ci)),
            ],
            out_specs=pl.BlockSpec((b_tile, H, W, c_tile),
                                   lambda bi, ci: (bi, 0, 0, ci)),
            scratch_shapes=[
                pltpu.VMEM((b_tile, H + 2 * pad, W + 2 * pad, c_tile), x.dtype)
            ],
        ),
        compiler_params=pltpu.CompilerParams(
            dimension_semantics=("parallel", "parallel"),
            vmem_limit_bytes=int(vmem_limit)),
    )(xs, w_taps, b)

    # (B, H, W, C) -> (B, N, C): contiguous relabel outside the kernel (free).
    return out4d.reshape(B, N, C)


def _reference(x, weight, bias, H, W):
    B, N, C = x.shape
    xi = jnp.transpose(x, (0, 2, 1)).reshape(B, C, H, W)
    y = jax.lax.conv_general_dilated(
        xi, weight, window_strides=(1, 1), padding=((1, 1), (1, 1)),
        dimension_numbers=("NCHW", "OIHW", "NCHW"), feature_group_count=C)
    y = y + bias[None, :, None, None]
    return jnp.transpose(y.reshape(B, C, H * W), (0, 2, 1))


if __name__ == "__main__":
    key = jax.random.PRNGKey(0)

    def run_case(B, C, H, W):
        N = H * W
        kx, kw, kb = jax.random.split(jax.random.fold_in(key, B * C * H * W), 3)
        x = jax.random.normal(kx, (B, N, C), dtype=jnp.float32)
        weight = jax.random.normal(kw, (C, 1, 3, 3), dtype=jnp.float32) * (1.0 / 3.0)
        bias = jax.random.normal(kb, (C,), dtype=jnp.float32) * 0.1

        out = jax.block_until_ready(dwconv_mulit(x, weight, bias, H, W))
        ref = _reference(x, weight, bias, H, W)
        assert out.shape == (B, N, C), out.shape
        err = float(jnp.max(jnp.abs(out - ref)))
        assert err < 1e-4, err

    # Primary small config consistent with the module: dim=C=128, B=2, H=W=16.
    run_case(2, 128, 16, 16)
    # Fallback paths: C not a multiple of 128 and a PVT-like small odd W.
    run_case(1, 96, 10, 7)

    print("KERNEL_OK")
</pallas_src>

<mosaic_0001>
module attributes {stable_mosaic.version = 11 : i64} {
  func.func @_dwconv_kernel(%arg0: i32, %arg1: i32, %arg2: memref<1x16x16x128xf32, #tpu.memory_space<vmem>>, %arg3: memref<9x128xf32, #tpu.memory_space<vmem>>, %arg4: memref<1x128xf32, #tpu.memory_space<vmem>>, %arg5: memref<1x16x16x128xf32, #tpu.memory_space<vmem>>, %arg6: memref<1x18x18x128xf32, #tpu.memory_space<vmem>>) attributes {dimension_semantics = [#tpu.dimension_semantics<parallel>, #tpu.dimension_semantics<parallel>], iteration_bounds = array<i64: 2, 1>, scalar_prefetch = 0 : i64, scratch_operands = 1 : i64, tpu.core_type = #tpu.core_type<tc>, window_params = [{transform_indices = @transform_0, window_bounds = array<i64: 1, 16, 16, 128>}, {transform_indices = @transform_1, window_bounds = array<i64: 9, 128>}, {transform_indices = @transform_2, window_bounds = array<i64: 1, 128>}, {transform_indices = @transform_3, window_bounds = array<i64: 1, 16, 16, 128>}]} {
    %cst = arith.constant 0.000000e+00 : f32
    %0 = vector.broadcast %cst : f32 to vector<1x1x18x128xf32>
    %c0 = arith.constant 0 : index
    %c0_0 = arith.constant 0 : index
    %c0_1 = arith.constant 0 : index
    %c0_2 = arith.constant 0 : index
    %1 = vector.load %arg6[%c0, %c0_0, %c0_1, %c0_2] : memref<1x18x18x128xf32, #tpu.memory_space<vmem>>, vector<1x1x18x128xf32>
    tpu.vector_store %arg6[%c0, %c0_0, %c0_1, %c0_2], %0 {strides = array<i32>} : memref<1x18x18x128xf32, #tpu.memory_space<vmem>>, vector<1x1x18x128xf32>,
    %cst_3 = arith.constant 0.000000e+00 : f32
    %2 = vector.broadcast %cst_3 : f32 to vector<1x1x18x128xf32>
    %c0_4 = arith.constant 0 : index
    %c17 = arith.constant 17 : index
    %c0_5 = arith.constant 0 : index
    %c0_6 = arith.constant 0 : index
    %3 = vector.load %arg6[%c0_4, %c17, %c0_5, %c0_6] : memref<1x18x18x128xf32, #tpu.memory_space<vmem>>, vector<1x1x18x128xf32>
    tpu.vector_store %arg6[%c0_4, %c17, %c0_5, %c0_6], %2 {strides = array<i32>} : memref<1x18x18x128xf32, #tpu.memory_space<vmem>>, vector<1x1x18x128xf32>,
    %cst_7 = arith.constant 0.000000e+00 : f32
    %4 = vector.broadcast %cst_7 : f32 to vector<1x18x1x128xf32>
    %c0_8 = arith.constant 0 : index
    %c0_9 = arith.constant 0 : index
    %c0_10 = arith.constant 0 : index
    %c0_11 = arith.constant 0 : index
    %5 = vector.load %arg6[%c0_8, %c0_9, %c0_10, %c0_11] : memref<1x18x18x128xf32, #tpu.memory_space<vmem>>, vector<1x18x1x128xf32>
    tpu.vector_store %arg6[%c0_8, %c0_9, %c0_10, %c0_11], %4 {strides = array<i32>} : memref<1x18x18x128xf32, #tpu.memory_space<vmem>>, vector<1x18x1x128xf32>,
    %cst_12 = arith.constant 0.000000e+00 : f32
    %6 = vector.broadcast %cst_12 : f32 to vector<1x18x1x128xf32>
    %c0_13 = arith.constant 0 : index
    %c0_14 = arith.constant 0 : index
    %c17_15 = arith.constant 17 : index
    %c0_16 = arith.constant 0 : index
    %7 = vector.load %arg6[%c0_13, %c0_14, %c17_15, %c0_16] : memref<1x18x18x128xf32, #tpu.memory_space<vmem>>, vector<1x18x1x128xf32>
    tpu.vector_store %arg6[%c0_13, %c0_14, %c17_15, %c0_16], %6 {strides = array<i32>} : memref<1x18x18x128xf32, #tpu.memory_space<vmem>>, vector<1x18x1x128xf32>,
    %c0_17 = arith.constant 0 : index
    %c0_18 = arith.constant 0 : index
    %c0_19 = arith.constant 0 : index
    %c0_20 = arith.constant 0 : index
    %8 = vector.load %arg2[%c0_17, %c0_18, %c0_19, %c0_20] : memref<1x16x16x128xf32, #tpu.memory_space<vmem>>, vector<1x16x16x128xf32>
    %c0_21 = arith.constant 0 : index
    %c1 = arith.constant 1 : index
    %c1_22 = arith.constant 1 : index
    %c0_23 = arith.constant 0 : index
    %9 = vector.load %arg6[%c0_21, %c1, %c1_22, %c0_23] : memref<1x18x18x128xf32, #tpu.memory_space<vmem>>, vector<1x16x16x128xf32>
    tpu.vector_store %arg6[%c0_21, %c1, %c1_22, %c0_23], %8 {strides = array<i32>} : memref<1x18x18x128xf32, #tpu.memory_space<vmem>>, vector<1x16x16x128xf32>,
    %c0_24 = arith.constant 0 : index
    %c0_25 = arith.constant 0 : index
    %10 = vector.load %arg3[%c0_24, %c0_25] : memref<9x128xf32, #tpu.memory_space<vmem>>, vector<9x128xf32>
    %c0_26 = arith.constant 0 : index
    %c0_27 = arith.constant 0 : index
    %c0_28 = arith.constant 0 : index
    %c0_29 = arith.constant 0 : index
    %11 = vector.load %arg6[%c0_26, %c0_27, %c0_28, %c0_29] : memref<1x18x18x128xf32, #tpu.memory_space<vmem>>, vector<1x16x16x128xf32>
    %12 = vector.extract_strided_slice %10 {offsets = [0, 0], sizes = [1, 128], strides = [1, 1]} : vector<9x128xf32> to vector<1x128xf32>
    %13 = vector.shape_cast %12 : vector<1x128xf32> to vector<128xf32>
    %14 = vector.shape_cast %13 : vector<128xf32> to vector<1x1x1x128xf32>
    %15 = vector.broadcast %14 : vector<1x1x1x128xf32> to vector<1x16x16x128xf32>
    %16 = arith.mulf %11, %15 : vector<1x16x16x128xf32>
    %c0_30 = arith.constant 0 : index
    %c0_31 = arith.constant 0 : index
    %c1_32 = arith.constant 1 : index
    %c0_33 = arith.constant 0 : index
    %17 = vector.load %arg6[%c0_30, %c0_31, %c1_32, %c0_33] : memref<1x18x18x128xf32, #tpu.memory_space<vmem>>, vector<1x16x16x128xf32>
    %18 = vector.extract_strided_slice %10 {offsets = [1, 0], sizes = [1, 128], strides = [1, 1]} : vector<9x128xf32> to vector<1x128xf32>
    %19 = vector.shape_cast %18 : vector<1x128xf32> to vector<128xf32>
    %20 = vector.shape_cast %19 : vector<128xf32> to vector<1x1x1x128xf32>
    %21 = vector.broadcast %20 : vector<1x1x1x128xf32> to vector<1x16x16x128xf32>
    %22 = arith.mulf %17, %21 : vector<1x16x16x128xf32>
    %23 = arith.addf %16, %22 : vector<1x16x16x128xf32>
    %c0_34 = arith.constant 0 : index
    %c0_35 = arith.constant 0 : index
    %c2 = arith.constant 2 : index
    %c0_36 = arith.constant 0 : index
    %24 = vector.load %arg6[%c0_34, %c0_35, %c2, %c0_36] : memref<1x18x18x128xf32, #tpu.memory_space<vmem>>, vector<1x16x16x128xf32>
    %25 = vector.extract_strided_slice %10 {offsets = [2, 0], sizes = [1, 128], strides = [1, 1]} : vector<9x128xf32> to vector<1x128xf32>
    %26 = vector.shape_cast %25 : vector<1x128xf32> to vector<128xf32>
    %27 = vector.shape_cast %26 : vector<128xf32> to vector<1x1x1x128xf32>
    %28 = vector.broadcast %27 : vector<1x1x1x128xf32> to vector<1x16x16x128xf32>
    %29 = arith.mulf %24, %28 : vector<1x16x16x128xf32>
    %30 = arith.addf %23, %29 : vector<1x16x16x128xf32>
    %c0_37 = arith.constant 0 : index
    %c1_38 = arith.constant 1 : index
    %c0_39 = arith.constant 0 : index
    %c0_40 = arith.constant 0 : index
    %31 = vector.load %arg6[%c0_37, %c1_38, %c0_39, %c0_40] : memref<1x18x18x128xf32, #tpu.memory_space<vmem>>, vector<1x16x16x128xf32>
    %32 = vector.extract_strided_slice %10 {offsets = [3, 0], sizes = [1, 128], strides = [1, 1]} : vector<9x128xf32> to vector<1x128xf32>
    %33 = vector.shape_cast %32 : vector<1x128xf32> to vector<128xf32>
    %34 = vector.shape_cast %33 : vector<128xf32> to vector<1x1x1x128xf32>
    %35 = vector.broadcast %34 : vector<1x1x1x128xf32> to vector<1x16x16x128xf32>
    %36 = arith.mulf %31, %35 : vector<1x16x16x128xf32>
    %37 = arith.addf %30, %36 : vector<1x16x16x128xf32>
    %c0_41 = arith.constant 0 : index
    %c1_42 = arith.constant 1 : index
    %c1_43 = arith.constant 1 : index
    %c0_44 = arith.constant 0 : index
    %38 = vector.load %arg6[%c0_41, %c1_42, %c1_43, %c0_44] : memref<1x18x18x128xf32, #tpu.memory_space<vmem>>, vector<1x16x16x128xf32>
    %39 = vector.extract_strided_slice %10 {offsets = [4, 0], sizes = [1, 128], strides = [1, 1]} : vector<9x128xf32> to vector<1x128xf32>
    %40 = vector.shape_cast %39 : vector<1x128xf32> to vector<128xf32>
    %41 = vector.shape_cast %40 : vector<128xf32> to vector<1x1x1x128xf32>
    %42 = vector.broadcast %41 : vector<1x1x1x128xf32> to vector<1x16x16x128xf32>
    %43 = arith.mulf %38, %42 : vector<1x16x16x128xf32>
    %44 = arith.addf %37, %43 : vector<1x16x16x128xf32>
    %c0_45 = arith.constant 0 : index
    %c1_46 = arith.constant 1 : index
    %c2_47 = arith.constant 2 : index
    %c0_48 = arith.constant 0 : index
    %45 = vector.load %arg6[%c0_45, %c1_46, %c2_47, %c0_48] : memref<1x18x18x128xf32, #tpu.memory_space<vmem>>, vector<1x16x16x128xf32>
    %46 = vector.extract_strided_slice %10 {offsets = [5, 0], sizes = [1, 128], strides = [1, 1]} : vector<9x128xf32> to vector<1x128xf32>
    %47 = vector.shape_cast %46 : vector<1x128xf32> to vector<128xf32>
    %48 = vector.shape_cast %47 : vector<128xf32> to vector<1x1x1x128xf32>
    %49 = vector.broadcast %48 : vector<1x1x1x128xf32> to vector<1x16x16x128xf32>
    %50 = arith.mulf %45, %49 : vector<1x16x16x128xf32>
    %51 = arith.addf %44, %50 : vector<1x16x16x128xf32>
    %c0_49 = arith.constant 0 : index
    %c2_50 = arith.constant 2 : index
    %c0_51 = arith.constant 0 : index
    %c0_52 = arith.constant 0 : index
    %52 = vector.load %arg6[%c0_49, %c2_50, %c0_51, %c0_52] : memref<1x18x18x128xf32, #tpu.memory_space<vmem>>, vector<1x16x16x128xf32>
    %53 = vector.extract_strided_slice %10 {offsets = [6, 0], sizes = [1, 128], strides = [1, 1]} : vector<9x128xf32> to vector<1x128xf32>
    %54 = vector.shape_cast %53 : vector<1x128xf32> to vector<128xf32>
    %55 = vector.shape_cast %54 : vector<128xf32> to vector<1x1x1x128xf32>
    %56 = vector.broadcast %55 : vector<1x1x1x128xf32> to vector<1x16x16x128xf32>
    %57 = arith.mulf %52, %56 : vector<1x16x16x128xf32>
    %58 = arith.addf %51, %57 : vector<1x16x16x128xf32>
    %c0_53 = arith.constant 0 : index
    %c2_54 = arith.constant 2 : index
    %c1_55 = arith.constant 1 : index
    %c0_56 = arith.constant 0 : index
    %59 = vector.load %arg6[%c0_53, %c2_54, %c1_55, %c0_56] : memref<1x18x18x128xf32, #tpu.memory_space<vmem>>, vector<1x16x16x128xf32>
    %60 = vector.extract_strided_slice %10 {offsets = [7, 0], sizes = [1, 128], strides = [1, 1]} : vector<9x128xf32> to vector<1x128xf32>
    %61 = vector.shape_cast %60 : vector<1x128xf32> to vector<128xf32>
    %62 = vector.shape_cast %61 : vector<128xf32> to vector<1x1x1x128xf32>
    %63 = vector.broadcast %62 : vector<1x1x1x128xf32> to vector<1x16x16x128xf32>
    %64 = arith.mulf %59, %63 : vector<1x16x16x128xf32>
    %65 = arith.addf %58, %64 : vector<1x16x16x128xf32>
    %c0_57 = arith.constant 0 : index
    %c2_58 = arith.constant 2 : index
    %c2_59 = arith.constant 2 : index
    %c0_60 = arith.constant 0 : index
    %66 = vector.load %arg6[%c0_57, %c2_58, %c2_59, %c0_60] : memref<1x18x18x128xf32, #tpu.memory_space<vmem>>, vector<1x16x16x128xf32>
    %67 = vector.extract_strided_slice %10 {offsets = [8, 0], sizes = [1, 128], strides = [1, 1]} : vector<9x128xf32> to vector<1x128xf32>
    %68 = vector.shape_cast %67 : vector<1x128xf32> to vector<128xf32>
    %69 = vector.shape_cast %68 : vector<128xf32> to vector<1x1x1x128xf32>
    %70 = vector.broadcast %69 : vector<1x1x1x128xf32> to vector<1x16x16x128xf32>
    %71 = arith.mulf %66, %70 : vector<1x16x16x128xf32>
    %72 = arith.addf %65, %71 : vector<1x16x16x128xf32>
    %c0_61 = arith.constant 0 : index
    %c0_62 = arith.constant 0 : index
    %73 = vector.load %arg4[%c0_61, %c0_62] : memref<1x128xf32, #tpu.memory_space<vmem>>, vector<1x128xf32>
    %74 = vector.shape_cast %73 : vector<1x128xf32> to vector<128xf32>
    %75 = vector.shape_cast %74 : vector<128xf32> to vector<1x1x1x128xf32>
    %76 = vector.broadcast %75 : vector<1x1x1x128xf32> to vector<1x16x16x128xf32>
    %77 = arith.addf %72, %76 : vector<1x16x16x128xf32>
    %c0_63 = arith.constant 0 : index
    %c0_64 = arith.constant 0 : index
    %c0_65 = arith.constant 0 : index
    %c0_66 = arith.constant 0 : index
    %78 = vector.load %arg5[%c0_63, %c0_64, %c0_65, %c0_66] : memref<1x16x16x128xf32, #tpu.memory_space<vmem>>, vector<1x16x16x128xf32>
    tpu.vector_store %arg5[%c0_63, %c0_64, %c0_65, %c0_66], %77 {strides = array<i32>} : memref<1x16x16x128xf32, #tpu.memory_space<vmem>>, vector<1x16x16x128xf32>,
    return
  }
  func.func @transform_0(%arg0: i32, %arg1: i32) -> (i32, i32, i32, i32) {
    %c0_i32 = arith.constant 0 : i32
    %c0_i32_0 = arith.constant 0 : i32
    %c0_i32_1 = arith.constant 0 : i32
    return %arg0, %c0_i32, %c0_i32_0, %arg1 : i32, i32, i32, i32
  }
  func.func @transform_1(%arg0: i32, %arg1: i32) -> (i32, i32) {
    %c0_i32 = arith.constant 0 : i32
    %c0_i32_0 = arith.constant 0 : i32
    return %c0_i32, %arg1 : i32, i32
  }
  func.func @transform_2(%arg0: i32, %arg1: i32) -> (i32, i32) {
    %c0_i32 = arith.constant 0 : i32
    %c0_i32_0 = arith.constant 0 : i32
    return %c0_i32, %arg1 : i32, i32
  }
  func.func @transform_3(%arg0: i32, %arg1: i32) -> (i32, i32, i32, i32) {
    %c0_i32 = arith.constant 0 : i32
    %c0_i32_0 = arith.constant 0 : i32
    %c0_i32_1 = arith.constant 0 : i32
    return %arg0, %c0_i32, %c0_i32_0, %arg1 : i32, i32, i32, i32
  }
}

</mosaic_0001>

<llo_original>
// kernel: tpu_custom_call.1
$region0: #{tpu_custom_call.1}
  #allocation0 [shape = 'u32[]', space=smem, size = 0x4, offset = 0x4, fixed_abs, tag = 'smem constant byte address 0x4 - core index']
  #allocation1 [shape = 'u32[144,128]{1,0:T(1,128)}', space=vmem, size = 0x12000, scoped, tag = 'internal scratch']
  #allocation2 [shape = 'f32[1,18,18,128]{3,2,1,0:T(8,128)}', space=vmem, size = 0x36000, scoped, tag = 'scratch operand']
  %s0 = inlined_call_operand.hbm [shape: f32[2,16,16,128], index: 0, kind: input, shape index: {}]
  %s1 = inlined_call_operand.hbm [shape: f32[9,128], index: 1, kind: input, shape index: {}]
  %s2 = inlined_call_operand.vmem [shape: f32[1,128], index: 2, kind: input, shape index: {}]
  %s3 = inlined_call_operand.hbm [shape: f32[2,16,16,128], index: 3, kind: output, shape index: {}]
  %s4 = sld [smem:[#allocation0]]
  $region53: #{tpu_custom_call.1} parent=0
    _
  %s6 = ssub.s32 1, %s4
  %s7 = scalar_select 0, %s6, %s4
  $region1: #{tpu_custom_call.1} parent=0
    #allocation3 [shape = 'u8[262144]{0}', space=vmem, size = 0x40000, scoped, tag = 'input window, operand 0']
    #allocation4 [shape = 's32[2]{0}', space=sflag, size = 0x8, scoped, tag = 'scoped memory for tpu_custom_call.1']
    #allocation5 [shape = 's32[2]{0}', space=sflag, size = 0x8, scoped, tag = 'scoped memory for tpu_custom_call.1']
    #allocation6 [shape = 'u8[8192]{0}', space=vmem, size = 0x2000, scoped, tag = 'input window, operand 1, single buffered']
    #allocation7 [shape = 's32[1]{0}', space=sflag, size = 0x4, scoped, tag = 'scoped memory for tpu_custom_call.1']
    #allocation8 [shape = 'u8[262144]{0}', space=vmem, size = 0x40000, scoped, tag = 'output window, operand 0']
    %8 = vsyncpa [#allocation4], 0
    %s9 = scalar_lea.sflag [#allocation4], 1
    %10 = vsyncpa %s9, 0
    %11 = vsyncpa [#allocation7], 0
    %12 = vsyncpa [#allocation5], 0
    %s13 = scalar_lea.sflag [#allocation5], 1
    %14 = vsyncpa %s13, 0
    loop: start=0, step=1, limit=4
    $region2: #{tpu_custom_call.1} parent=1 // loop_pre_header
      _
    $region3: #{tpu_custom_call.1} parent=1 // loop_header
      %s16 = sphi 0, %s20
      %p17 = scmp.ge.s32.totalorder %s16, 4
      %s23 = sphi 0, %s35
      %s24 = sphi 0, %s31
      %s25 = sphi 0, %s23
      %s26 = sphi 0, %s24
      %s27 = sphi 0, %s25
      %s28 = sphi 0, %s26
      %s40 = sphi 0, %s42
      %s43 = sphi 0, %s40
      %s44 = sphi 0, %s43
      %s60 = sphi 0, %s44
      %s66 = sphi 0, %s68
      %s69 = sphi 0, %s66
      %s70 = sphi 0, %s69
      %s86 = sphi 0, %s70
      %s92 = sphi 0, %s94
      %s95 = sphi 0, %s92
      %s96 = sphi 0, %s95
      %s112 = sphi 0, %s96
      %s120 = sphi 0, %s122
      %s123 = sphi 0, %s120
      %s124 = sphi 0, %s123
      %s140 = sphi 0, %s124
    $region4: #{tpu_custom_call.1} parent=1 // loop_header_branch
      %19 = sbr.rel (%p17) target = $region8
    $region5: #{tpu_custom_call.1} parent=1 // loop_body
      %s21 = ssub.s32 %s16, 1
      %s22 = ssub.s32 %s16, 2
      %s29 = sadd.s32 1, %s24
      %p30 = scmp.ge.s32.totalorder %s29, 1
      %s31 = scalar_select %p30, 0, %s29
      %s32 = sadd.s32 1, %s23
      %s33 = scalar_select %p30, %s32, %s23
      %p34 = scmp.ge.s32.totalorder %s33, 2
      %s35 = scalar_select %p34, 0, %s33
      %s36 = ssub.s32 %s23, %s35
      %s37 = ssub.s32 %s24, %s31
      %s38 = sor.u32 %s36, %s37
      %p39 = scmp.eq.s32.totalorder %s38, 0
      %s41 = sadd.s32 %s40, 1
      %s42 = scalar_select %p39, %s40, %s41
      %p45 = pneg %p39
      %p46 = scmp.eq.s32.totalorder %s16, 1
      %p47 = por %p45, %p46
      %p48 = scmp.ne.s32.totalorder %s40, %s43
      %p49 = scmp.eq.s32.totalorder %s16, 0
      %p50 = por %p48, %p49
      %p51 = scmp.ne.s32.totalorder %s40, %s43
      %p52 = scmp.eq.s32.totalorder %s21, 1
      %p53 = por %p51, %p52
      %p54 = scmp.ne.s32.totalorder %s43, %s44
      %p55 = scmp.eq.s32.totalorder %s21, 0
      %p56 = por %p54, %p55
      %p57 = scmp.ne.s32.totalorder %s43, %s44
      %p58 = scmp.eq.s32.totalorder %s22, 1
      %p59 = por %p57, %p58
      %p61 = scmp.ne.s32.totalorder %s44, %s60
      %p62 = scmp.eq.s32.totalorder %s22, 0
      %p63 = por %p61, %p62
      %s64 = ssub.s32 %s24, %s31
      %p65 = scmp.eq.s32.totalorder %s64, 0
      %s67 = sadd.s32 %s66, 1
      %s68 = scalar_select %p65, %s66, %s67
      %p71 = pneg %p65
      %p72 = scmp.eq.s32.totalorder %s16, 1
      %p73 = por %p71, %p72
      %p74 = scmp.ne.s32.totalorder %s66, %s69
      %p75 = scmp.eq.s32.totalorder %s16, 0
      %p76 = por %p74, %p75
      %p77 = scmp.ne.s32.totalorder %s66, %s69
      %p78 = scmp.eq.s32.totalorder %s21, 1
      %p79 = por %p77, %p78
      %p80 = scmp.ne.s32.totalorder %s69, %s70
      %p81 = scmp.eq.s32.totalorder %s21, 0
      %p82 = por %p80, %p81
      %p83 = scmp.ne.s32.totalorder %s69, %s70
      %p84 = scmp.eq.s32.totalorder %s22, 1
      %p85 = por %p83, %p84
      %p87 = scmp.ne.s32.totalorder %s70, %s86
      %p88 = scmp.eq.s32.totalorder %s22, 0
      %p89 = por %p87, %p88
      %s90 = ssub.s32 %s24, %s31
      %p91 = scmp.eq.s32.totalorder %s90, 0
      %s93 = sadd.s32 %s92, 1
      %s94 = scalar_select %p91, %s92, %s93
      %p97 = pneg %p91
      %p98 = scmp.eq.s32.totalorder %s16, 1
      %p99 = por %p97, %p98
      %p100 = scmp.ne.s32.totalorder %s92, %s95
      %p101 = scmp.eq.s32.totalorder %s16, 0
      %p102 = por %p100, %p101
      %p103 = scmp.ne.s32.totalorder %s92, %s95
      %p104 = scmp.eq.s32.totalorder %s21, 1
      %p105 = por %p103, %p104
      %p106 = scmp.ne.s32.totalorder %s95, %s96
      %p107 = scmp.eq.s32.totalorder %s21, 0
      %p108 = por %p106, %p107
      %p109 = scmp.ne.s32.totalorder %s95, %s96
      %p110 = scmp.eq.s32.totalorder %s22, 1
      %p111 = por %p109, %p110
      %p113 = scmp.ne.s32.totalorder %s96, %s112
      %p114 = scmp.eq.s32.totalorder %s22, 0
      %p115 = por %p113, %p114
      %s116 = ssub.s32 %s23, %s35
      %s117 = ssub.s32 %s24, %s31
      %s118 = sor.u32 %s116, %s117
      %p119 = scmp.eq.s32.totalorder %s118, 0
      %s121 = sadd.s32 %s120, 1
      %s122 = scalar_select %p119, %s120, %s121
      %p125 = pneg %p119
      %p126 = scmp.eq.s32.totalorder %s16, 1
      %p127 = por %p125, %p126
      %p128 = scmp.ne.s32.totalorder %s120, %s123
      %p129 = scmp.eq.s32.totalorder %s16, 0
      %p130 = por %p128, %p129
      %p131 = scmp.ne.s32.totalorder %s120, %s123
      %p132 = scmp.eq.s32.totalorder %s21, 1
      %p133 = por %p131, %p132
      %p134 = scmp.ne.s32.totalorder %s123, %s124
      %p135 = scmp.eq.s32.totalorder %s21, 0
      %p136 = por %p134, %p135
      %p137 = scmp.ne.s32.totalorder %s123, %s124
      %p138 = scmp.eq.s32.totalorder %s22, 1
      %p139 = por %p137, %p138
      %p141 = scmp.ne.s32.totalorder %s124, %s140
      %p142 = scmp.eq.s32.totalorder %s22, 0
      %p143 = por %p141, %p142
      %p144 = scmp.le.s32.totalorder 1, %s16
      %p145 = scmp.lt.s32.totalorder %s16, 3
      %p146 = pnand %p144, %p145
      %p147 = pneg %p146
      // Predicated region
      $region9: #{tpu_custom_call.1} parent=5 // pred_check
        _
      $region10: #{tpu_custom_call.1} parent=5 // pred_check_branch
        %149 = sbr.rel (%p146) target = $region12
      $region11: #{tpu_custom_call.1} parent=5 // pred_region
        %s150 = ssub.s32 %s16, 1
        // Predicated region
        $region13: #{tpu_custom_call.1} parent=11 // pred_check
          %p151 = pneg %p82
        $region14: #{tpu_custom_call.1} parent=11 // pred_check_branch
          %153 = sbr.rel (%p151) target = $region16
        $region15: #{tpu_custom_call.1} parent=11 // pred_region
          %s155 = ssub.s32 256, 256
          %156 = vsyncadd [#allocation7], %s155
          %s157 = smul.addr %s26, 128
          %s158 = scalar_lea.hbm %s1, %s157
          %s159 = sshll.u32 [#allocation6], 4
          %s160 = int_to_ptr.vmem [resolvable:$true] %s159
          %165 = dma.hbm_to_vmem [thread:$0]  %s158, 256, %s160, [#allocation7], 128, 128, 8
        $region16: #{tpu_custom_call.1} parent=11 // pred_fallthru
          _
        // Predicated region
        $region17: #{tpu_custom_call.1} parent=11 // pred_check
          %p166 = pneg %p108
        $region18: #{tpu_custom_call.1} parent=11 // pred_check_branch
          %168 = sbr.rel (%p166) target = $region20
        $region19: #{tpu_custom_call.1} parent=11 // pred_region
          %p169 = scmp.lt.s32.totalorder %s26, 0
          %s170 = scalar_select %p169, %s26, 0
          %s171 = scalar_lea.vmem %s2, %s170
        $region20: #{tpu_custom_call.1} parent=11 // pred_fallthru
          _
      $region12: #{tpu_custom_call.1} parent=5 // pred_fallthru
        _
      %p172 = scmp.lt.s32.totalorder %s16, 2
      // Predicated region
      $region21: #{tpu_custom_call.1} parent=5 // pred_check
        %p173 = pneg %p172
      $region22: #{tpu_custom_call.1} parent=5 // pred_check_branch
        %175 = sbr.rel (%p173) target = $region24
      $region23: #{tpu_custom_call.1} parent=5 // pred_region
        // Predicated region
        $region25: #{tpu_custom_call.1} parent=23 // pred_check
          %p176 = pneg %p50
        $region26: #{tpu_custom_call.1} parent=23 // pred_check_branch
          %178 = sbr.rel (%p176) target = $region28
        $region27: #{tpu_custom_call.1} parent=23 // pred_region
          %s179 = sand.u32 %s40, 1
          %s180 = scalar_lea.sflag [#allocation4], %s179
          %s181 = sand.u32 %s40, 1
          %s182 = smul.addr %s181, 256
          %s183 = scalar_lea.vmem [#allocation3], %s182
          %s185 = ssub.s32 4096, 4096
          %186 = vsyncadd %s180, %s185
          %s187 = smul.addr %s23, 32
          %s188 = sadd.s32 %s24, %s187
          %s189 = smul.addr %s188, 128
          %s190 = scalar_lea.hbm %s0, %s189
          %s191 = sshll.u32 %s183, 4
          %s192 = int_to_ptr.vmem [resolvable:$true] %s191
          %197 = dma.hbm_to_vmem [thread:$0]  %s190, 4096, %s192, %s180, 128, 128, 8
        $region28: #{tpu_custom_call.1} parent=23 // pred_fallthru
          _
      $region24: #{tpu_custom_call.1} parent=5 // pred_fallthru
        _
      %p198 = scmp.le.s32.totalorder 1, %s16
      %p199 = scmp.lt.s32.totalorder %s16, 3
      %p200 = pnand %p198, %p199
      %p201 = pneg %p200
      // Predicated region
      $region29: #{tpu_custom_call.1} parent=5 // pred_check
        _
      $region30: #{tpu_custom_call.1} parent=5 // pred_check_branch
        %203 = sbr.rel (%p200) target = $region32
      $region31: #{tpu_custom_call.1} parent=5 // pred_region
        %s204 = ssub.s32 %s16, 1
        %s205 = sand.u32 %s43, 1
        %s206 = scalar_lea.sflag [#allocation4], %s205
        %s207 = sand.u32 %s43, 1
        %s208 = smul.addr %s207, 256
        %s209 = scalar_lea.vmem [#allocation3], %s208
        // Predicated region
        $region33: #{tpu_custom_call.1} parent=31 // pred_check
          %p210 = pneg %p56
        $region34: #{tpu_custom_call.1} parent=31 // pred_check_branch
          %212 = sbr.rel (%p210) target = $region36
        $region35: #{tpu_custom_call.1} parent=31 // pred_region
          %213 = dma.done %s206, 4096
        $region36: #{tpu_custom_call.1} parent=31 // pred_fallthru
          _
        // Predicated region
        $region37: #{tpu_custom_call.1} parent=31 // pred_check
          %p214 = pneg %p82
        $region38: #{tpu_custom_call.1} parent=31 // pred_check_branch
          %216 = sbr.rel (%p214) target = $region40
        $region39: #{tpu_custom_call.1} parent=31 // pred_region
          %217 = dma.done [#allocation7], 256
        $region40: #{tpu_custom_call.1} parent=31 // pred_fallthru
          _
        %s218 = sand.u32 %s43, 1
        %s219 = scalar_lea.sflag [#allocation4], %s218
        %s220 = sand.u32 %s43, 1
        %s221 = smul.addr %s220, 256
        %s222 = scalar_lea.vmem [#allocation3], %s221
        %p223 = pneg %p56
        %p224 = pneg %p53
        %p225 = pneg %p82
        %p226 = pneg %p79
        %p227 = scmp.lt.s32.totalorder %s26, 0
        %s228 = scalar_select %p227, %s26, 0
        %s229 = scalar_lea.vmem %s2, %s228
        %p230 = pneg %p108
        %p231 = pneg %p105
        %p232 = pneg %p136
        %p233 = pneg %p133
        %s234 = sand.u32 %s123, 1
        %s235 = scalar_lea.sflag [#allocation5], %s234
        %s236 = sand.u32 %s123, 1
        %s237 = smul.addr %s236, 256
        %s238 = scalar_lea.vmem [#allocation8], %s237
        %p239 = scmp.lt.s32.totalorder %s26, 0
        %s240 = scalar_select %p239, %s26, 0
        %s241 = scalar_lea.vmem %s2, %s240
        %242 = vst [vmem:[#allocation2] sm:$0xff] 0.0
        %243 = vst [vmem:[#allocation2 + $0x8] sm:$0xff] 0.0
        %244 = vst [vmem:[#allocation2 + $0x10] sm:$0x3] 0.0
        %s245 = scalar_lea.vmem [#allocation2], 408
        %246 = vst [vmem:[%s245] sm:$0xff] 0.0
        %247 = vst [vmem:[%s245 + $0x8] sm:$0xff] 0.0
        %248 = vst [vmem:[%s245 + $0x10] sm:$0x3] 0.0
        %249 = vst [vmem:[#allocation2] sm:$0x1] 0.0
        %250 = vst [vmem:[#allocation2 + $0x18] sm:$0x1] 0.0
        %251 = vst [vmem:[#allocation2 + $0x30] sm:$0x1] 0.0
        %252 = vst [vmem:[#allocation2 + $0x48] sm:$0x1] 0.0
        %253 = vst [vmem:[#allocation2 + $0x60] sm:$0x1] 0.0
        %254 = vst [vmem:[#allocation2 + $0x78] sm:$0x1] 0.0
        %255 = vst [vmem:[#allocation2 + $0x90] sm:$0x1] 0.0
        %256 = vst [vmem:[#allocation2 + $0xa8] sm:$0x1] 0.0
        %257 = vst [vmem:[#allocation2 + $0xc0] sm:$0x1] 0.0
        %258 = vst [vmem:[#allocation2 + $0xd8] sm:$0x1] 0.0
        %259 = vst [vmem:[#allocation2 + $0xf0] sm:$0x1] 0.0
        %260 = vst [vmem:[#allocation2 + $0x108] sm:$0x1] 0.0
        %261 = vst [vmem:[#allocation2 + $0x120] sm:$0x1] 0.0
        %262 = vst [vmem:[#allocation2 + $0x138] sm:$0x1] 0.0
        %263 = vst [vmem:[#allocation2 + $0x150] sm:$0x1] 0.0
        %264 = vst [vmem:[#allocation2 + $0x168] sm:$0x1] 0.0
        %265 = vst [vmem:[#allocation2 + $0x180] sm:$0x1] 0.0
        %266 = vst [vmem:[#allocation2 + $0x198] sm:$0x1] 0.0
        %267 = vst [vmem:[#allocation2 + $0x11] sm:$0x1] 0.0
        %268 = vst [vmem:[#allocation2 + $0x29] sm:$0x1] 0.0
        %269 = vst [vmem:[#allocation2 + $0x41] sm:$0x1] 0.0
        %270 = vst [vmem:[#allocation2 + $0x59] sm:$0x1] 0.0
        %271 = vst [vmem:[#allocation2 + $0x71] sm:$0x1] 0.0
        %272 = vst [vmem:[#allocation2 + $0x89] sm:$0x1] 0.0
        %273 = vst [vmem:[#allocation2 + $0xa1] sm:$0x1] 0.0
        %274 = vst [vmem:[#allocation2 + $0xb9] sm:$0x1] 0.0
        %275 = vst [vmem:[#allocation2 + $0xd1] sm:$0x1] 0.0
        %276 = vst [vmem:[#allocation2 + $0xe9] sm:$0x1] 0.0
        %277 = vst [vmem:[#allocation2 + $0x101] sm:$0x1] 0.0
        %278 = vst [vmem:[#allocation2 + $0x119] sm:$0x1] 0.0
        %279 = vst [vmem:[#allocation2 + $0x131] sm:$0x1] 0.0
        %280 = vst [vmem:[#allocation2 + $0x149] sm:$0x1] 0.0
        %281 = vst [vmem:[#allocation2 + $0x161] sm:$0x1] 0.0
        %282 = vst [vmem:[#allocation2 + $0x179] sm:$0x1] 0.0
        %283 = vst [vmem:[#allocation2 + $0x191] sm:$0x1] 0.0
        %284 = vst [vmem:[#allocation2 + $0x1a9] sm:$0x1] 0.0
        %v285 = vld [vmem:[%s209] sm:$0xff]
        %v286 = vld [vmem:[%s209 + $0x8] sm:$0xff]
        %v287 = vld [vmem:[%s209 + $0x10] sm:$0xff]
        %v288 = vld [vmem:[%s209 + $0x18] sm:$0xff]
        %v289 = vld [vmem:[%s209 + $0x20] sm:$0xff]
        %v290 = vld [vmem:[%s209 + $0x28] sm:$0xff]
        %v291 = vld [vmem:[%s209 + $0x30] sm:$0xff]
        %v292 = vld [vmem:[%s209 + $0x38] sm:$0xff]
        %v293 = vld [vmem:[%s209 + $0x40] sm:$0xff]
        %v294 = vld [vmem:[%s209 + $0x48] sm:$0xff]
        %v295 = vld [vmem:[%s209 + $0x50] sm:$0xff]
        %v296 = vld [vmem:[%s209 + $0x58] sm:$0xff]
        %v297 = vld [vmem:[%s209 + $0x60] sm:$0xff]
        %v298 = vld [vmem:[%s209 + $0x68] sm:$0xff]
        %v299 = vld [vmem:[%s209 + $0x70] sm:$0xff]
        %v300 = vld [vmem:[%s209 + $0x78] sm:$0xff]
        %v301 = vld [vmem:[%s209 + $0x80] sm:$0xff]
        %v302 = vld [vmem:[%s209 + $0x88] sm:$0xff]
        %v303 = vld [vmem:[%s209 + $0x90] sm:$0xff]
        %v304 = vld [vmem:[%s209 + $0x98] sm:$0xff]
        %v305 = vld [vmem:[%s209 + $0xa0] sm:$0xff]
        %v306 = vld [vmem:[%s209 + $0xa8] sm:$0xff]
        %v307 = vld [vmem:[%s209 + $0xb0] sm:$0xff]
        %v308 = vld [vmem:[%s209 + $0xb8] sm:$0xff]
        %v309 = vld [vmem:[%s209 + $0xc0] sm:$0xff]
        %v310 = vld [vmem:[%s209 + $0xc8] sm:$0xff]
        %v311 = vld [vmem:[%s209 + $0xd0] sm:$0xff]
        %v312 = vld [vmem:[%s209 + $0xd8] sm:$0xff]
        %v313 = vld [vmem:[%s209 + $0xe0] sm:$0xff]
        %v314 = vld [vmem:[%s209 + $0xe8] sm:$0xff]
        %v315 = vld [vmem:[%s209 + $0xf0] sm:$0xff]
        %v316 = vld [vmem:[%s209 + $0xf8] sm:$0xff]
        %s317 = scalar_lea.vmem [#allocation2], 24
        %318 = vst [vmem:[%s317 + $0x1] sm:$0xff] %v285
        %319 = vst [vmem:[%s317 + $0x9] sm:$0xff] %v286
        %320 = vst [vmem:[%s317 + $0x19] sm:$0xff] %v287
        %321 = vst [vmem:[%s317 + $0x21] sm:$0xff] %v288
        %322 = vst [vmem:[%s317 + $0x31] sm:$0xff] %v289
        %323 = vst [vmem:[%s317 + $0x39] sm:$0xff] %v290
        %324 = vst [vmem:[%s317 + $0x49] sm:$0xff] %v291
        %325 = vst [vmem:[%s317 + $0x51] sm:$0xff] %v292
        %326 = vst [vmem:[%s317 + $0x61] sm:$0xff] %v293
        %327 = vst [vmem:[%s317 + $0x69] sm:$0xff] %v294
        %328 = vst [vmem:[%s317 + $0x79] sm:$0xff] %v295
        %329 = vst [vmem:[%s317 + $0x81] sm:$0xff] %v296
        %330 = vst [vmem:[%s317 + $0x91] sm:$0xff] %v297
        %331 = vst [vmem:[%s317 + $0x99] sm:$0xff] %v298
        %332 = vst [vmem:[%s317 + $0xa9] sm:$0xff] %v299
        %333 = vst [vmem:[%s317 + $0xb1] sm:$0xff] %v300
        %334 = vst [vmem:[%s317 + $0xc1] sm:$0xff] %v301
        %335 = vst [vmem:[%s317 + $0xc9] sm:$0xff] %v302
        %336 = vst [vmem:[%s317 + $0xd9] sm:$0xff] %v303
        %337 = vst [vmem:[%s317 + $0xe1] sm:$0xff] %v304
        %338 = vst [vmem:[%s317 + $0xf1] sm:$0xff] %v305
        %339 = vst [vmem:[%s317 + $0xf9] sm:$0xff] %v306
        %340 = vst [vmem:[%s317 + $0x109] sm:$0xff] %v307
        %341 = vst [vmem:[%s317 + $0x111] sm:$0xff] %v308
        %342 = vst [vmem:[%s317 + $0x121] sm:$0xff] %v309
        %343 = vst [vmem:[%s317 + $0x129] sm:$0xff] %v310
        %344 = vst [vmem:[%s317 + $0x139] sm:$0xff] %v311
        %345 = vst [vmem:[%s317 + $0x141] sm:$0xff] %v312
        %346 = vst [vmem:[%s317 + $0x151] sm:$0xff] %v313
        %347 = vst [vmem:[%s317 + $0x159] sm:$0xff] %v314
        %348 = vst [vmem:[%s317 + $0x169] sm:$0xff] %v315
        %349 = vst [vmem:[%s317 + $0x171] sm:$0xff] %v316
        %v350 = vld [vmem:[#allocation6] sm:$0xff]
        %v351 = vld [vmem:[#allocation6 + $0x8] sm:$0x1]
        %v352 = vld [vmem:[#allocation2] sm:$0xff]
        %v353 = vld [vmem:[#allocation2 + $0x8] sm:$0xff]
        %v354 = vld [vmem:[#allocation2 + $0x18] sm:$0xff]
        %v355 = vld [vmem:[#allocation2 + $0x20] sm:$0xff]
        %v356 = vld [vmem:[#allocation2 + $0x30] sm:$0xff]
        %v357 = vld [vmem:[#allocation2 + $0x38] sm:$0xff]
        %v358 = vld [vmem:[#allocation2 + $0x48] sm:$0xff]
        %v359 = vld [vmem:[#allocation2 + $0x50] sm:$0xff]
        %v360 = vld [vmem:[#allocation2 + $0x60] sm:$0xff]
        %v361 = vld [vmem:[#allocation2 + $0x68] sm:$0xff]
        %v362 = vld [vmem:[#allocation2 + $0x78] sm:$0xff]
        %v363 = vld [vmem:[#allocation2 + $0x80] sm:$0xff]
        %v364 = vld [vmem:[#allocation2 + $0x90] sm:$0xff]
        %v365 = vld [vmem:[#allocation2 + $0x98] sm:$0xff]
        %v366 = vld [vmem:[#allocation2 + $0xa8] sm:$0xff]
        %v367 = vld [vmem:[#allocation2 + $0xb0] sm:$0xff]
        %v368 = vld [vmem:[#allocation2 + $0xc0] sm:$0xff]
        %v369 = vld [vmem:[#allocation2 + $0xc8] sm:$0xff]
        %v370 = vld [vmem:[#allocation2 + $0xd8] sm:$0xff]
        %v371 = vld [vmem:[#allocation2 + $0xe0] sm:$0xff]
        %v372 = vld [vmem:[#allocation2 + $0xf0] sm:$0xff]
        %v373 = vld [vmem:[#allocation2 + $0xf8] sm:$0xff]
        %v374 = vld [vmem:[#allocation2 + $0x108] sm:$0xff]
        %v375 = vld [vmem:[#allocation2 + $0x110] sm:$0xff]
        %v376 = vld [vmem:[#allocation2 + $0x120] sm:$0xff]
        %v377 = vld [vmem:[#allocation2 + $0x128] sm:$0xff]
        %v378 = vld [vmem:[#allocation2 + $0x138] sm:$0xff]
        %v379 = vld [vmem:[#allocation2 + $0x140] sm:$0xff]
        %v380 = vld [vmem:[#allocation2 + $0x150] sm:$0xff]
        %v381 = vld [vmem:[#allocation2 + $0x158] sm:$0xff]
        %v382 = vld [vmem:[#allocation2 + $0x168] sm:$0xff]
        %v383 = vld [vmem:[#allocation2 + $0x170] sm:$0xff]
        %v384 = vlaneseq
        %v385 = vshrl.u32 %v384, 7
        %v386 = vsub.s32 0, %v385
        %v387 = vrot.slane %v350, %v386
        %v388 = vmul.f32 %v352, %v387
        %v389 = vmul.f32 %v353, %v387
        %v390 = vmul.f32 %v354, %v387
        %v391 = vmul.f32 %v355, %v387
        %v392 = vmul.f32 %v356, %v387
        %v393 = vmul.f32 %v357, %v387
        %v394 = vmul.f32 %v358, %v387
        %v395 = vmul.f32 %v359, %v387
        %v396 = vmul.f32 %v360, %v387
        %v397 = vmul.f32 %v361, %v387
        %v398 = vmul.f32 %v362, %v387
        %v399 = vmul.f32 %v363, %v387
        %v400 = vmul.f32 %v364, %v387
        %v401 = vmul.f32 %v365, %v387
        %v402 = vmul.f32 %v366, %v387
        %v403 = vmul.f32 %v367, %v387
        %v404 = vmul.f32 %v368, %v387
        %v405 = vmul.f32 %v369, %v387
        %v406 = vmul.f32 %v370, %v387
        %v407 = vmul.f32 %v371, %v387
        %v408 = vmul.f32 %v372, %v387
        %v409 = vmul.f32 %v373, %v387
        %v410 = vmul.f32 %v374, %v387
        %v411 = vmul.f32 %v375, %v387
        %v412 = vmul.f32 %v376, %v387
        %v413 = vmul.f32 %v377, %v387
        %v414 = vmul.f32 %v378, %v387
        %v415 = vmul.f32 %v379, %v387
        %v416 = vmul.f32 %v380, %v387
        %v417 = vmul.f32 %v381, %v387
        %v418 = vmul.f32 %v382, %v387
        %v419 = vmul.f32 %v383, %v387
        %v420 = vld [vmem:[#allocation2 + $0x1] sm:$0xff]
        %v421 = vld [vmem:[#allocation2 + $0x9] sm:$0xff]
        %v422 = vld [vmem:[#allocation2 + $0x19] sm:$0xff]
        %v423 = vld [vmem:[#allocation2 + $0x21] sm:$0xff]
        %v424 = vld [vmem:[#allocation2 + $0x31] sm:$0xff]
        %v425 = vld [vmem:[#allocation2 + $0x39] sm:$0xff]
        %v426 = vld [vmem:[#allocation2 + $0x49] sm:$0xff]
        %v427 = vld [vmem:[#allocation2 + $0x51] sm:$0xff]
        %v428 = vld [vmem:[#allocation2 + $0x61] sm:$0xff]
        %v429 = vld [vmem:[#allocation2 + $0x69] sm:$0xff]
        %v430 = vld [vmem:[#allocation2 + $0x79] sm:$0xff]
        %v431 = vld [vmem:[#allocation2 + $0x81] sm:$0xff]
        %v432 = vld [vmem:[#allocation2 + $0x91] sm:$0xff]
        %v433 = vld [vmem:[#allocation2 + $0x99] sm:$0xff]
        %v434 = vld [vmem:[#allocation2 + $0xa9] sm:$0xff]
        %v435 = vld [vmem:[#allocation2 + $0xb1] sm:$0xff]
        %v436 = vld [vmem:[#allocation2 + $0xc1] sm:$0xff]
        %v437 = vld [vmem:[#allocation2 + $0xc9] sm:$0xff]
        %v438 = vld [vmem:[#allocation2 + $0xd9] sm:$0xff]
        %v439 = vld [vmem:[#allocation2 + $0xe1] sm:$0xff]
        %v440 = vld [vmem:[#allocation2 + $0xf1] sm:$0xff]
        %v441 = vld [vmem:[#allocation2 + $0xf9] sm:$0xff]
        %v442 = vld [vmem:[#allocation2 + $0x109] sm:$0xff]
        %v443 = vld [vmem:[#allocation2 + $0x111] sm:$0xff]
        %v444 = vld [vmem:[#allocation2 + $0x121] sm:$0xff]
        %v445 = vld [vmem:[#allocation2 + $0x129] sm:$0xff]
        %v446 = vld [vmem:[#allocation2 + $0x139] sm:$0xff]
        %v447 = vld [vmem:[#allocation2 + $0x141] sm:$0xff]
        %v448 = vld [vmem:[#allocation2 + $0x151] sm:$0xff]
        %v449 = vld [vmem:[#allocation2 + $0x159] sm:$0xff]
        %v450 = vld [vmem:[#allocation2 + $0x169] sm:$0xff]
        %v451 = vld [vmem:[#allocation2 + $0x171] sm:$0xff]
        %v452 = vlaneseq
        %v453 = vshrl.u32 %v452, 7
        %v454 = vsub.s32 1, %v453
        %v455 = vrot.slane %v350, %v454
        %v456 = vmul.f32 %v420, %v455
        %v457 = vmul.f32 %v421, %v455
        %v458 = vmul.f32 %v422, %v455
        %v459 = vmul.f32 %v423, %v455
        %v460 = vmul.f32 %v424, %v455
        %v461 = vmul.f32 %v425, %v455
        %v462 = vmul.f32 %v426, %v455
        %v463 = vmul.f32 %v427, %v455
        %v464 = vmul.f32 %v428, %v455
        %v465 = vmul.f32 %v429, %v455
        %v466 = vmul.f32 %v430, %v455
        %v467 = vmul.f32 %v431, %v455
        %v468 = vmul.f32 %v432, %v455
        %v469 = vmul.f32 %v433, %v455
        %v470 = vmul.f32 %v434, %v455
        %v471 = vmul.f32 %v435, %v455
        %v472 = vmul.f32 %v436, %v455
        %v473 = vmul.f32 %v437, %v455
        %v474 = vmul.f32 %v438, %v455
        %v475 = vmul.f32 %v439, %v455
        %v476 = vmul.f32 %v440, %v455
        %v477 = vmul.f32 %v441, %v455
        %v478 = vmul.f32 %v442, %v455
        %v479 = vmul.f32 %v443, %v455
        %v480 = vmul.f32 %v444, %v455
        %v481 = vmul.f32 %v445, %v455
        %v482 = vmul.f32 %v446, %v455
        %v483 = vmul.f32 %v447, %v455
        %v484 = vmul.f32 %v448, %v455
        %v485 = vmul.f32 %v449, %v455
        %v486 = vmul.f32 %v450, %v455
        %v487 = vmul.f32 %v451, %v455
        %v488 = vadd.f32 %v388, %v456
        %v489 = vadd.f32 %v389, %v457
        %v490 = vadd.f32 %v390, %v458
        %v491 = vadd.f32 %v391, %v459
        %v492 = vadd.f32 %v392, %v460
        %v493 = vadd.f32 %v393, %v461
        %v494 = vadd.f32 %v394, %v462
        %v495 = vadd.f32 %v395, %v463
        %v496 = vadd.f32 %v396, %v464
        %v497 = vadd.f32 %v397, %v465
        %v498 = vadd.f32 %v398, %v466
        %v499 = vadd.f32 %v399, %v467
        %v500 = vadd.f32 %v400, %v468
        %v501 = vadd.f32 %v401, %v469
        %v502 = vadd.f32 %v402, %v470
        %v503 = vadd.f32 %v403, %v471
        %v504 = vadd.f32 %v404, %v472
        %v505 = vadd.f32 %v405, %v473
        %v506 = vadd.f32 %v406, %v474
        %v507 = vadd.f32 %v407, %v475
        %v508 = vadd.f32 %v408, %v476
        %v509 = vadd.f32 %v409, %v477
        %v510 = vadd.f32 %v410, %v478
        %v511 = vadd.f32 %v411, %v479
        %v512 = vadd.f32 %v412, %v480
        %v513 = vadd.f32 %v413, %v481
        %v514 = vadd.f32 %v414, %v482
        %v515 = vadd.f32 %v415, %v483
        %v516 = vadd.f32 %v416, %v484
        %v517 = vadd.f32 %v417, %v485
        %v518 = vadd.f32 %v418, %v486
        %v519 = vadd.f32 %v419, %v487
        %v520 = vld [vmem:[#allocation2 + $0x2] sm:$0xff]
        %v521 = vld [vmem:[#allocation2 + $0xa] sm:$0xff]
        %v522 = vld [vmem:[#allocation2 + $0x1a] sm:$0xff]
        %v523 = vld [vmem:[#allocation2 + $0x22] sm:$0xff]
        %v524 = vld [vmem:[#allocation2 + $0x32] sm:$0xff]
        %v525 = vld [vmem:[#allocation2 + $0x3a] sm:$0xff]
        %v526 = vld [vmem:[#allocation2 + $0x4a] sm:$0xff]
        %v527 = vld [vmem:[#allocation2 + $0x52] sm:$0xff]
        %v528 = vld [vmem:[#allocation2 + $0x62] sm:$0xff]
        %v529 = vld [vmem:[#allocation2 + $0x6a] sm:$0xff]
        %v530 = vld [vmem:[#allocation2 + $0x7a] sm:$0xff]
        %v531 = vld [vmem:[#allocation2 + $0x82] sm:$0xff]
        %v532 = vld [vmem:[#allocation2 + $0x92] sm:$0xff]
        %v533 = vld [vmem:[#allocation2 + $0x9a] sm:$0xff]
        %v534 = vld [vmem:[#allocation2 + $0xaa] sm:$0xff]
        %v535 = vld [vmem:[#allocation2 + $0xb2] sm:$0xff]
        %v536 = vld [vmem:[#allocation2 + $0xc2] sm:$0xff]
        %v537 = vld [vmem:[#allocation2 + $0xca] sm:$0xff]
        %v538 = vld [vmem:[#allocation2 + $0xda] sm:$0xff]
        %v539 = vld [vmem:[#allocation2 + $0xe2] sm:$0xff]
        %v540 = vld [vmem:[#allocation2 + $0xf2] sm:$0xff]
        %v541 = vld [vmem:[#allocation2 + $0xfa] sm:$0xff]
        %v542 = vld [vmem:[#allocation2 + $0x10a] sm:$0xff]
        %v543 = vld [vmem:[#allocation2 + $0x112] sm:$0xff]
        %v544 = vld [vmem:[#allocation2 + $0x122] sm:$0xff]
        %v545 = vld [vmem:[#allocation2 + $0x12a] sm:$0xff]
        %v546 = vld [vmem:[#allocation2 + $0x13a] sm:$0xff]
        %v547 = vld [vmem:[#allocation2 + $0x142] sm:$0xff]
        %v548 = vld [vmem:[#allocation2 + $0x152] sm:$0xff]
        %v549 = vld [vmem:[#allocation2 + $0x15a] sm:$0xff]
        %v550 = vld [vmem:[#allocation2 + $0x16a] sm:$0xff]
        %v551 = vld [vmem:[#allocation2 + $0x172] sm:$0xff]
        %v552 = vlaneseq
        %v553 = vshrl.u32 %v552, 7
        %v554 = vsub.s32 2, %v553
        %v555 = vrot.slane %v350, %v554
        %v556 = vmul.f32 %v520, %v555
        %v557 = vmul.f32 %v521, %v555
        %v558 = vmul.f32 %v522, %v555
        %v559 = vmul.f32 %v523, %v555
        %v560 = vmul.f32 %v524, %v555
        %v561 = vmul.f32 %v525, %v555
        %v562 = vmul.f32 %v526, %v555
        %v563 = vmul.f32 %v527, %v555
        %v564 = vmul.f32 %v528, %v555
        %v565 = vmul.f32 %v529, %v555
        %v566 = vmul.f32 %v530, %v555
        %v567 = vmul.f32 %v531, %v555
        %v568 = vmul.f32 %v532, %v555
        %v569 = vmul.f32 %v533, %v555
        %v570 = vmul.f32 %v534, %v555
        %v571 = vmul.f32 %v535, %v555
        %v572 = vmul.f32 %v536, %v555
        %v573 = vmul.f32 %v537, %v555
        %v574 = vmul.f32 %v538, %v555
        %v575 = vmul.f32 %v539, %v555
        %v576 = vmul.f32 %v540, %v555
        %v577 = vmul.f32 %v541, %v555
        %v578 = vmul.f32 %v542, %v555
        %v579 = vmul.f32 %v543, %v555
        %v580 = vmul.f32 %v544, %v555
        %v581 = vmul.f32 %v545, %v555
        %v582 = vmul.f32 %v546, %v555
        %v583 = vmul.f32 %v547, %v555
        %v584 = vmul.f32 %v548, %v555
        %v585 = vmul.f32 %v549, %v555
        %v586 = vmul.f32 %v550, %v555
        %v587 = vmul.f32 %v551, %v555
        %v588 = vadd.f32 %v488, %v556
        %v589 = vadd.f32 %v489, %v557
        %v590 = vadd.f32 %v490, %v558
        %v591 = vadd.f32 %v491, %v559
        %v592 = vadd.f32 %v492, %v560
        %v593 = vadd.f32 %v493, %v561
        %v594 = vadd.f32 %v494, %v562
        %v595 = vadd.f32 %v495, %v563
        %v596 = vadd.f32 %v496, %v564
        %v597 = vadd.f32 %v497, %v565
        %v598 = vadd.f32 %v498, %v566
        %v599 = vadd.f32 %v499, %v567
        %v600 = vadd.f32 %v500, %v568
        %v601 = vadd.f32 %v501, %v569
        %v602 = vadd.f32 %v502, %v570
        %v603 = vadd.f32 %v503, %v571
        %v604 = vadd.f32 %v504, %v572
        %v605 = vadd.f32 %v505, %v573
        %v606 = vadd.f32 %v506, %v574
        %v607 = vadd.f32 %v507, %v575
        %v608 = vadd.f32 %v508, %v576
        %v609 = vadd.f32 %v509, %v577
        %v610 = vadd.f32 %v510, %v578
        %v611 = vadd.f32 %v511, %v579
        %v612 = vadd.f32 %v512, %v580
        %v613 = vadd.f32 %v513, %v581
        %v614 = vadd.f32 %v514, %v582
        %v615 = vadd.f32 %v515, %v583
        %v616 = vadd.f32 %v516, %v584
        %v617 = vadd.f32 %v517, %v585
        %v618 = vadd.f32 %v518, %v586
        %v619 = vadd.f32 %v519, %v587
        %v620 = vld [vmem:[%s317] sm:$0xff]
        %v621 = vld [vmem:[%s317 + $0x8] sm:$0xff]
        %v622 = vld [vmem:[%s317 + $0x18] sm:$0xff]
        %v623 = vld [vmem:[%s317 + $0x20] sm:$0xff]
        %v624 = vld [vmem:[%s317 + $0x30] sm:$0xff]
        %v625 = vld [vmem:[%s317 + $0x38] sm:$0xff]
        %v626 = vld [vmem:[%s317 + $0x48] sm:$0xff]
        %v627 = vld [vmem:[%s317 + $0x50] sm:$0xff]
        %v628 = vld [vmem:[%s317 + $0x60] sm:$0xff]
        %v629 = vld [vmem:[%s317 + $0x68] sm:$0xff]
        %v630 = vld [vmem:[%s317 + $0x78] sm:$0xff]
        %v631 = vld [vmem:[%s317 + $0x80] sm:$0xff]
        %v632 = vld [vmem:[%s317 + $0x90] sm:$0xff]
        %v633 = vld [vmem:[%s317 + $0x98] sm:$0xff]
        %v634 = vld [vmem:[%s317 + $0xa8] sm:$0xff]
        %v635 = vld [vmem:[%s317 + $0xb0] sm:$0xff]
        %v636 = vld [vmem:[%s317 + $0xc0] sm:$0xff]
        %v637 = vld [vmem:[%s317 + $0xc8] sm:$0xff]
        %v638 = vld [vmem:[%s317 + $0xd8] sm:$0xff]
        %v639 = vld [vmem:[%s317 + $0xe0] sm:$0xff]
        %v640 = vld [vmem:[%s317 + $0xf0] sm:$0xff]
        %v641 = vld [vmem:[%s317 + $0xf8] sm:$0xff]
        %v642 = vld [vmem:[%s317 + $0x108] sm:$0xff]
        %v643 = vld [vmem:[%s317 + $0x110] sm:$0xff]
        %v644 = vld [vmem:[%s317 + $0x120] sm:$0xff]
        %v645 = vld [vmem:[%s317 + $0x128] sm:$0xff]
        %v646 = vld [vmem:[%s317 + $0x138] sm:$0xff]
        %v647 = vld [vmem:[%s317 + $0x140] sm:$0xff]
        %v648 = vld [vmem:[%s317 + $0x150] sm:$0xff]
        %v649 = vld [vmem:[%s317 + $0x158] sm:$0xff]
        %v650 = vld [vmem:[%s317 + $0x168] sm:$0xff]
        %v651 = vld [vmem:[%s317 + $0x170] sm:$0xff]
        %v652 = vlaneseq
        %v653 = vshrl.u32 %v652, 7
        %v654 = vsub.s32 3, %v653
        %v655 = vrot.slane %v350, %v654
        %v656 = vmul.f32 %v620, %v655
        %v657 = vmul.f32 %v621, %v655
        %v658 = vmul.f32 %v622, %v655
        %v659 = vmul.f32 %v623, %v655
        %v660 = vmul.f32 %v624, %v655
        %v661 = vmul.f32 %v625, %v655
        %v662 = vmul.f32 %v626, %v655
        %v663 = vmul.f32 %v627, %v655
        %v664 = vmul.f32 %v628, %v655
        %v665 = vmul.f32 %v629, %v655
        %v666 = vmul.f32 %v630, %v655
        %v667 = vmul.f32 %v631, %v655
        %v668 = vmul.f32 %v632, %v655
        %v669 = vmul.f32 %v633, %v655
        %v670 = vmul.f32 %v634, %v655
        %v671 = vmul.f32 %v635, %v655
        %v672 = vmul.f32 %v636, %v655
        %v673 = vmul.f32 %v637, %v655
        %v674 = vmul.f32 %v638, %v655
        %v675 = vmul.f32 %v639, %v655
        %v676 = vmul.f32 %v640, %v655
        %v677 = vmul.f32 %v641, %v655
        %v678 = vmul.f32 %v642, %v655
        %v679 = vmul.f32 %v643, %v655
        %v680 = vmul.f32 %v644, %v655
        %v681 = vmul.f32 %v645, %v655
        %v682 = vmul.f32 %v646, %v655
        %v683 = vmul.f32 %v647, %v655
        %v684 = vmul.f32 %v648, %v655
        %v685 = vmul.f32 %v649, %v655
        %v686 = vmul.f32 %v650, %v655
        %v687 = vmul.f32 %v651, %v655
        %v688 = vadd.f32 %v588, %v656
        %v689 = vadd.f32 %v589, %v657
        %v690 = vadd.f32 %v590, %v658
        %v691 = vadd.f32 %v591, %v659
        %v692 = vadd.f32 %v592, %v660
        %v693 = vadd.f32 %v593, %v661
        %v694 = vadd.f32 %v594, %v662
        %v695 = vadd.f32 %v595, %v663
        %v696 = vadd.f32 %v596, %v664
        %v697 = vadd.f32 %v597, %v665
        %v698 = vadd.f32 %v598, %v666
        %v699 = vadd.f32 %v599, %v667
        %v700 = vadd.f32 %v600, %v668
        %v701 = vadd.f32 %v601, %v669
        %v702 = vadd.f32 %v602, %v670
        %v703 = vadd.f32 %v603, %v671
        %v704 = vadd.f32 %v604, %v672
        %v705 = vadd.f32 %v605, %v673
        %v706 = vadd.f32 %v606, %v674
        %v707 = vadd.f32 %v607, %v675
        %v708 = vadd.f32 %v608, %v676
        %v709 = vadd.f32 %v609, %v677
        %v710 = vadd.f32 %v610, %v678
        %v711 = vadd.f32 %v611, %v679
        %v712 = vadd.f32 %v612, %v680
        %v713 = vadd.f32 %v613, %v681
        %v714 = vadd.f32 %v614, %v682
        %v715 = vadd.f32 %v615, %v683
        %v716 = vadd.f32 %v616, %v684
        %v717 = vadd.f32 %v617, %v685
        %v718 = vadd.f32 %v618, %v686
        %v719 = vadd.f32 %v619, %v687
        %v720 = vld [vmem:[%s317 + $0x1] sm:$0xff]
        %v721 = vld [vmem:[%s317 + $0x9] sm:$0xff]
        %v722 = vld [vmem:[%s317 + $0x19] sm:$0xff]
        %v723 = vld [vmem:[%s317 + $0x21] sm:$0xff]
        %v724 = vld [vmem:[%s317 + $0x31] sm:$0xff]
        %v725 = vld [vmem:[%s317 + $0x39] sm:$0xff]
        %v726 = vld [vmem:[%s317 + $0x49] sm:$0xff]
        %v727 = vld [vmem:[%s317 + $0x51] sm:$0xff]
        %v728 = vld [vmem:[%s317 + $0x61] sm:$0xff]
        %v729 = vld [vmem:[%s317 + $0x69] sm:$0xff]
        %v730 = vld [vmem:[%s317 + $0x79] sm:$0xff]
        %v731 = vld [vmem:[%s317 + $0x81] sm:$0xff]
        %v732 = vld [vmem:[%s317 + $0x91] sm:$0xff]
        %v733 = vld [vmem:[%s317 + $0x99] sm:$0xff]
        %v734 = vld [vmem:[%s317 + $0xa9] sm:$0xff]
        %v735 = vld [vmem:[%s317 + $0xb1] sm:$0xff]
        %v736 = vld [vmem:[%s317 + $0xc1] sm:$0xff]
        %v737 = vld [vmem:[%s317 + $0xc9] sm:$0xff]
        %v738 = vld [vmem:[%s317 + $0xd9] sm:$0xff]
        %v739 = vld [vmem:[%s317 + $0xe1] sm:$0xff]
        %v740 = vld [vmem:[%s317 + $0xf1] sm:$0xff]
        %v741 = vld [vmem:[%s317 + $0xf9] sm:$0xff]
        %v742 = vld [vmem:[%s317 + $0x109] sm:$0xff]
        %v743 = vld [vmem:[%s317 + $0x111] sm:$0xff]
        %v744 = vld [vmem:[%s317 + $0x121] sm:$0xff]
        %v745 = vld [vmem:[%s317 + $0x129] sm:$0xff]
        %v746 = vld [vmem:[%s317 + $0x139] sm:$0xff]
        %v747 = vld [vmem:[%s317 + $0x141] sm:$0xff]
        %v748 = vld [vmem:[%s317 + $0x151] sm:$0xff]
        %v749 = vld [vmem:[%s317 + $0x159] sm:$0xff]
        %v750 = vld [vmem:[%s317 + $0x169] sm:$0xff]
        %v751 = vld [vmem:[%s317 + $0x171] sm:$0xff]
        %v752 = vlaneseq
        %v753 = vshrl.u32 %v752, 7
        %v754 = vsub.s32 4, %v753
        %v755 = vrot.slane %v350, %v754
        %v756 = vmul.f32 %v720, %v755
        %v757 = vmul.f32 %v721, %v755
        %v758 = vmul.f32 %v722, %v755
        %v759 = vmul.f32 %v723, %v755
        %v760 = vmul.f32 %v724, %v755
        %v761 = vmul.f32 %v725, %v755
        %v762 = vmul.f32 %v726, %v755
        %v763 = vmul.f32 %v727, %v755
        %v764 = vmul.f32 %v728, %v755
        %v765 = vmul.f32 %v729, %v755
        %v766 = vmul.f32 %v730, %v755
        %v767 = vmul.f32 %v731, %v755
        %v768 = vmul.f32 %v732, %v755
        %v769 = vmul.f32 %v733, %v755
        %v770 = vmul.f32 %v734, %v755
        %v771 = vmul.f32 %v735, %v755
        %v772 = vmul.f32 %v736, %v755
        %v773 = vmul.f32 %v737, %v755
        %v774 = vmul.f32 %v738, %v755
        %v775 = vmul.f32 %v739, %v755
        %v776 = vmul.f32 %v740, %v755
        %v777 = vmul.f32 %v741, %v755
        %v778 = vmul.f32 %v742, %v755
        %v779 = vmul.f32 %v743, %v755
        %v780 = vmul.f32 %v744, %v755
        %v781 = vmul.f32 %v745, %v755
        %v782 = vmul.f32 %v746, %v755
        %v783 = vmul.f32 %v747, %v755
        %v784 = vmul.f32 %v748, %v755
        %v785 = vmul.f32 %v749, %v755
        %v786 = vmul.f32 %v750, %v755
        %v787 = vmul.f32 %v751, %v755
        %v788 = vadd.f32 %v688, %v756
        %v789 = vadd.f32 %v689, %v757
        %v790 = vadd.f32 %v690, %v758
        %v791 = vadd.f32 %v691, %v759
        %v792 = vadd.f32 %v692, %v760
        %v793 = vadd.f32 %v693, %v761
        %v794 = vadd.f32 %v694, %v762
        %v795 = vadd.f32 %v695, %v763
        %v796 = vadd.f32 %v696, %v764
        %v797 = vadd.f32 %v697, %v765
        %v798 = vadd.f32 %v698, %v766
        %v799 = vadd.f32 %v699, %v767
        %v800 = vadd.f32 %v700, %v768
        %v801 = vadd.f32 %v701, %v769
        %v802 = vadd.f32 %v702, %v770
        %v803 = vadd.f32 %v703, %v771
        %v804 = vadd.f32 %v704, %v772
        %v805 = vadd.f32 %v705, %v773
        %v806 = vadd.f32 %v706, %v774
        %v807 = vadd.f32 %v707, %v775
        %v808 = vadd.f32 %v708, %v776
        %v809 = vadd.f32 %v709, %v777
        %v810 = vadd.f32 %v710, %v778
        %v811 = vadd.f32 %v711, %v779
        %v812 = vadd.f32 %v712, %v780
        %v813 = vadd.f32 %v713, %v781
        %v814 = vadd.f32 %v714, %v782
        %v815 = vadd.f32 %v715, %v783
        %v816 = vadd.f32 %v716, %v784
        %v817 = vadd.f32 %v717, %v785
        %v818 = vadd.f32 %v718, %v786
        %v819 = vadd.f32 %v719, %v787
        %v820 = vld [vmem:[%s317 + $0x2] sm:$0xff]
        %v821 = vld [vmem:[%s317 + $0xa] sm:$0xff]
        %v822 = vld [vmem:[%s317 + $0x1a] sm:$0xff]
        %v823 = vld [vmem:[%s317 + $0x22] sm:$0xff]
        %v824 = vld [vmem:[%s317 + $0x32] sm:$0xff]
        %v825 = vld [vmem:[%s317 + $0x3a] sm:$0xff]
        %v826 = vld [vmem:[%s317 + $0x4a] sm:$0xff]
        %v827 = vld [vmem:[%s317 + $0x52] sm:$0xff]
        %v828 = vld [vmem:[%s317 + $0x62] sm:$0xff]
        %v829 = vld [vmem:[%s317 + $0x6a] sm:$0xff]
        %v830 = vld [vmem:[%s317 + $0x7a] sm:$0xff]
        %v831 = vld [vmem:[%s317 + $0x82] sm:$0xff]
        %v832 = vld [vmem:[%s317 + $0x92] sm:$0xff]
        %v833 = vld [vmem:[%s317 + $0x9a] sm:$0xff]
        %v834 = vld [vmem:[%s317 + $0xaa] sm:$0xff]
        %v835 = vld [vmem:[%s317 + $0xb2] sm:$0xff]
        %v836 = vld [vmem:[%s317 + $0xc2] sm:$0xff]
        %v837 = vld [vmem:[%s317 + $0xca] sm:$0xff]
        %v838 = vld [vmem:[%s317 + $0xda] sm:$0xff]
        %v839 = vld [vmem:[%s317 + $0xe2] sm:$0xff]
        %v840 = vld [vmem:[%s317 + $0xf2] sm:$0xff]
        %v841 = vld [vmem:[%s317 + $0xfa] sm:$0xff]
        %v842 = vld [vmem:[%s317 + $0x10a] sm:$0xff]
        %v843 = vld [vmem:[%s317 + $0x112] sm:$0xff]
        %v844 = vld [vmem:[%s317 + $0x122] sm:$0xff]
        %v845 = vld [vmem:[%s317 + $0x12a] sm:$0xff]
        %v846 = vld [vmem:[%s317 + $0x13a] sm:$0xff]
        %v847 = vld [vmem:[%s317 + $0x142] sm:$0xff]
        %v848 = vld [vmem:[%s317 + $0x152] sm:$0xff]
        %v849 = vld [vmem:[%s317 + $0x15a] sm:$0xff]
        %v850 = vld [vmem:[%s317 + $0x16a] sm:$0xff]
        %v851 = vld [vmem:[%s317 + $0x172] sm:$0xff]
        %v852 = vlaneseq
        %v853 = vshrl.u32 %v852, 7
        %v854 = vsub.s32 5, %v853
        %v855 = vrot.slane %v350, %v854
        %v856 = vmul.f32 %v820, %v855
        %v857 = vmul.f32 %v821, %v855
        %v858 = vmul.f32 %v822, %v855
        %v859 = vmul.f32 %v823, %v855
        %v860 = vmul.f32 %v824, %v855
        %v861 = vmul.f32 %v825, %v855
        %v862 = vmul.f32 %v826, %v855
        %v863 = vmul.f32 %v827, %v855
        %v864 = vmul.f32 %v828, %v855
        %v865 = vmul.f32 %v829, %v855
        %v866 = vmul.f32 %v830, %v855
        %v867 = vmul.f32 %v831, %v855
        %v868 = vmul.f32 %v832, %v855
        %v869 = vmul.f32 %v833, %v855
        %v870 = vmul.f32 %v834, %v855
        %v871 = vmul.f32 %v835, %v855
        %v872 = vmul.f32 %v836, %v855
        %v873 = vmul.f32 %v837, %v855
        %v874 = vmul.f32 %v838, %v855
        %v875 = vmul.f32 %v839, %v855
        %v876 = vmul.f32 %v840, %v855
        %v877 = vmul.f32 %v841, %v855
        %v878 = vmul.f32 %v842, %v855
        %v879 = vmul.f32 %v843, %v855
        %v880 = vmul.f32 %v844, %v855
        %v881 = vmul.f32 %v845, %v855
        %v882 = vmul.f32 %v846, %v855
        %v883 = vmul.f32 %v847, %v855
        %v884 = vmul.f32 %v848, %v855
        %v885 = vmul.f32 %v849, %v855
        %v886 = vmul.f32 %v850, %v855
        %v887 = vmul.f32 %v851, %v855
        %v888 = vadd.f32 %v788, %v856
        %v889 = vadd.f32 %v789, %v857
        %v890 = vadd.f32 %v790, %v858
        %v891 = vadd.f32 %v791, %v859
        %v892 = vadd.f32 %v792, %v860
        %v893 = vadd.f32 %v793, %v861
        %v894 = vadd.f32 %v794, %v862
        %v895 = vadd.f32 %v795, %v863
        %v896 = vadd.f32 %v796, %v864
        %v897 = vadd.f32 %v797, %v865
        %v898 = vadd.f32 %v798, %v866
        %v899 = vadd.f32 %v799, %v867
        %v900 = vadd.f32 %v800, %v868
        %v901 = vadd.f32 %v801, %v869
        %v902 = vadd.f32 %v802, %v870
        %v903 = vadd.f32 %v803, %v871
        %v904 = vadd.f32 %v804, %v872
        %v905 = vadd.f32 %v805, %v873
        %v906 = vadd.f32 %v806, %v874
        %v907 = vadd.f32 %v807, %v875
        %v908 = vadd.f32 %v808, %v876
        %v909 = vadd.f32 %v809, %v877
        %v910 = vadd.f32 %v810, %v878
        %v911 = vadd.f32 %v811, %v879
        %v912 = vadd.f32 %v812, %v880
        %v913 = vadd.f32 %v813, %v881
        %v914 = vadd.f32 %v814, %v882
        %v915 = vadd.f32 %v815, %v883
        %v916 = vadd.f32 %v816, %v884
        %v917 = vadd.f32 %v817, %v885
        %v918 = vadd.f32 %v818, %v886
        %v919 = vadd.f32 %v819, %v887
        %s920 = scalar_lea.vmem [#allocation2], 48
        %v921 = vld [vmem:[%s920] sm:$0xff]
        %v922 = vld [vmem:[%s920 + $0x8] sm:$0xff]
        %v923 = vld [vmem:[%s920 + $0x18] sm:$0xff]
        %v924 = vld [vmem:[%s920 + $0x20] sm:$0xff]
        %v925 = vld [vmem:[%s920 + $0x30] sm:$0xff]
        %v926 = vld [vmem:[%s920 + $0x38] sm:$0xff]
        %v927 = vld [vmem:[%s920 + $0x48] sm:$0xff]
        %v928 = vld [vmem:[%s920 + $0x50] sm:$0xff]
        %v929 = vld [vmem:[%s920 + $0x60] sm:$0xff]
        %v930 = vld [vmem:[%s920 + $0x68] sm:$0xff]
        %v931 = vld [vmem:[%s920 + $0x78] sm:$0xff]
        %v932 = vld [vmem:[%s920 + $0x80] sm:$0xff]
        %v933 = vld [vmem:[%s920 + $0x90] sm:$0xff]
        %v934 = vld [vmem:[%s920 + $0x98] sm:$0xff]
        %v935 = vld [vmem:[%s920 + $0xa8] sm:$0xff]
        %v936 = vld [vmem:[%s920 + $0xb0] sm:$0xff]
        %v937 = vld [vmem:[%s920 + $0xc0] sm:$0xff]
        %v938 = vld [vmem:[%s920 + $0xc8] sm:$0xff]
        %v939 = vld [vmem:[%s920 + $0xd8] sm:$0xff]
        %v940 = vld [vmem:[%s920 + $0xe0] sm:$0xff]
        %v941 = vld [vmem:[%s920 + $0xf0] sm:$0xff]
        %v942 = vld [vmem:[%s920 + $0xf8] sm:$0xff]
        %v943 = vld [vmem:[%s920 + $0x108] sm:$0xff]
        %v944 = vld [vmem:[%s920 + $0x110] sm:$0xff]
        %v945 = vld [vmem:[%s920 + $0x120] sm:$0xff]
        %v946 = vld [vmem:[%s920 + $0x128] sm:$0xff]
        %v947 = vld [vmem:[%s920 + $0x138] sm:$0xff]
        %v948 = vld [vmem:[%s920 + $0x140] sm:$0xff]
        %v949 = vld [vmem:[%s920 + $0x150] sm:$0xff]
        %v950 = vld [vmem:[%s920 + $0x158] sm:$0xff]
        %v951 = vld [vmem:[%s920 + $0x168] sm:$0xff]
        %v952 = vld [vmem:[%s920 + $0x170] sm:$0xff]
        %v953 = vlaneseq
        %v954 = vshrl.u32 %v953, 7
        %v955 = vsub.s32 6, %v954
        %v956 = vrot.slane %v350, %v955
        %v957 = vmul.f32 %v921, %v956
        %v958 = vmul.f32 %v922, %v956
        %v959 = vmul.f32 %v923, %v956
        %v960 = vmul.f32 %v924, %v956
        %v961 = vmul.f32 %v925, %v956
        %v962 = vmul.f32 %v926, %v956
        %v963 = vmul.f32 %v927, %v956
        %v964 = vmul.f32 %v928, %v956
        %v965 = vmul.f32 %v929, %v956
        %v966 = vmul.f32 %v930, %v956
        %v967 = vmul.f32 %v931, %v956
        %v968 = vmul.f32 %v932, %v956
        %v969 = vmul.f32 %v933, %v956
        %v970 = vmul.f32 %v934, %v956
        %v971 = vmul.f32 %v935, %v956
        %v972 = vmul.f32 %v936, %v956
        %v973 = vmul.f32 %v937, %v956
        %v974 = vmul.f32 %v938, %v956
        %v975 = vmul.f32 %v939, %v956
        %v976 = vmul.f32 %v940, %v956
        %v977 = vmul.f32 %v941, %v956
        %v978 = vmul.f32 %v942, %v956
        %v979 = vmul.f32 %v943, %v956
        %v980 = vmul.f32 %v944, %v956
        %v981 = vmul.f32 %v945, %v956
        %v982 = vmul.f32 %v946, %v956
        %v983 = vmul.f32 %v947, %v956
        %v984 = vmul.f32 %v948, %v956
        %v985 = vmul.f32 %v949, %v956
        %v986 = vmul.f32 %v950, %v956
        %v987 = vmul.f32 %v951, %v956
        %v988 = vmul.f32 %v952, %v956
        %v989 = vadd.f32 %v888, %v957
        %v990 = vadd.f32 %v889, %v958
        %v991 = vadd.f32 %v890, %v959
        %v992 = vadd.f32 %v891, %v960
        %v993 = vadd.f32 %v892, %v961
        %v994 = vadd.f32 %v893, %v962
        %v995 = vadd.f32 %v894, %v963
        %v996 = vadd.f32 %v895, %v964
        %v997 = vadd.f32 %v896, %v965
        %v998 = vadd.f32 %v897, %v966
        %v999 = vadd.f32 %v898, %v967
        %v1000 = vadd.f32 %v899, %v968
        %v1001 = vadd.f32 %v900, %v969
        %v1002 = vadd.f32 %v901, %v970
        %v1003 = vadd.f32 %v902, %v971
        %v1004 = vadd.f32 %v903, %v972
        %v1005 = vadd.f32 %v904, %v973
        %v1006 = vadd.f32 %v905, %v974
        %v1007 = vadd.f32 %v906, %v975
        %v1008 = vadd.f32 %v907, %v976
        %v1009 = vadd.f32 %v908, %v977
        %v1010 = vadd.f32 %v909, %v978
        %v1011 = vadd.f32 %v910, %v979
        %v1012 = vadd.f32 %v911, %v980
        %v1013 = vadd.f32 %v912, %v981
        %v1014 = vadd.f32 %v913, %v982
        %v1015 = vadd.f32 %v914, %v983
        %v1016 = vadd.f32 %v915, %v984
        %v1017 = vadd.f32 %v916, %v985
        %v1018 = vadd.f32 %v917, %v986
        %v1019 = vadd.f32 %v918, %v987
        %v1020 = vadd.f32 %v919, %v988
        %v1021 = vld [vmem:[%s920 + $0x1] sm:$0xff]
        %v1022 = vld [vmem:[%s920 + $0x9] sm:$0xff]
        %v1023 = vld [vmem:[%s920 + $0x19] sm:$0xff]
        %v1024 = vld [vmem:[%s920 + $0x21] sm:$0xff]
        %v1025 = vld [vmem:[%s920 + $0x31] sm:$0xff]
        %v1026 = vld [vmem:[%s920 + $0x39] sm:$0xff]
        %v1027 = vld [vmem:[%s920 + $0x49] sm:$0xff]
        %v1028 = vld [vmem:[%s920 + $0x51] sm:$0xff]
        %v1029 = vld [vmem:[%s920 + $0x61] sm:$0xff]
        %v1030 = vld [vmem:[%s920 + $0x69] sm:$0xff]
        %v1031 = vld [vmem:[%s920 + $0x79] sm:$0xff]
        %v1032 = vld [vmem:[%s920 + $0x81] sm:$0xff]
        %v1033 = vld [vmem:[%s920 + $0x91] sm:$0xff]
        %v1034 = vld [vmem:[%s920 + $0x99] sm:$0xff]
        %v1035 = vld [vmem:[%s920 + $0xa9] sm:$0xff]
        %v1036 = vld [vmem:[%s920 + $0xb1] sm:$0xff]
        %v1037 = vld [vmem:[%s920 + $0xc1] sm:$0xff]
        %v1038 = vld [vmem:[%s920 + $0xc9] sm:$0xff]
        %v1039 = vld [vmem:[%s920 + $0xd9] sm:$0xff]
        %v1040 = vld [vmem:[%s920 + $0xe1] sm:$0xff]
        %v1041 = vld [vmem:[%s920 + $0xf1] sm:$0xff]
        %v1042 = vld [vmem:[%s920 + $0xf9] sm:$0xff]
        %v1043 = vld [vmem:[%s920 + $0x109] sm:$0xff]
        %v1044 = vld [vmem:[%s920 + $0x111] sm:$0xff]
        %v1045 = vld [vmem:[%s920 + $0x121] sm:$0xff]
        %v1046 = vld [vmem:[%s920 + $0x129] sm:$0xff]
        %v1047 = vld [vmem:[%s920 + $0x139] sm:$0xff]
        %v1048 = vld [vmem:[%s920 + $0x141] sm:$0xff]
        %v1049 = vld [vmem:[%s920 + $0x151] sm:$0xff]
        %v1050 = vld [vmem:[%s920 + $0x159] sm:$0xff]
        %v1051 = vld [vmem:[%s920 + $0x169] sm:$0xff]
        %v1052 = vld [vmem:[%s920 + $0x171] sm:$0xff]
        %v1053 = vlaneseq
        %v1054 = vshrl.u32 %v1053, 7
        %v1055 = vsub.s32 7, %v1054
        %v1056 = vrot.slane %v350, %v1055
        %v1057 = vmul.f32 %v1021, %v1056
        %v1058 = vmul.f32 %v1022, %v1056
        %v1059 = vmul.f32 %v1023, %v1056
        %v1060 = vmul.f32 %v1024, %v1056
        %v1061 = vmul.f32 %v1025, %v1056
        %v1062 = vmul.f32 %v1026, %v1056
        %v1063 = vmul.f32 %v1027, %v1056
        %v1064 = vmul.f32 %v1028, %v1056
        %v1065 = vmul.f32 %v1029, %v1056
        %v1066 = vmul.f32 %v1030, %v1056
        %v1067 = vmul.f32 %v1031, %v1056
        %v1068 = vmul.f32 %v1032, %v1056
        %v1069 = vmul.f32 %v1033, %v1056
        %v1070 = vmul.f32 %v1034, %v1056
        %v1071 = vmul.f32 %v1035, %v1056
        %v1072 = vmul.f32 %v1036, %v1056
        %v1073 = vmul.f32 %v1037, %v1056
        %v1074 = vmul.f32 %v1038, %v1056
        %v1075 = vmul.f32 %v1039, %v1056
        %v1076 = vmul.f32 %v1040, %v1056
        %v1077 = vmul.f32 %v1041, %v1056
        %v1078 = vmul.f32 %v1042, %v1056
        %v1079 = vmul.f32 %v1043, %v1056
        %v1080 = vmul.f32 %v1044, %v1056
        %v1081 = vmul.f32 %v1045, %v1056
        %v1082 = vmul.f32 %v1046, %v1056
        %v1083 = vmul.f32 %v1047, %v1056
        %v1084 = vmul.f32 %v1048, %v1056
        %v1085 = vmul.f32 %v1049, %v1056
        %v1086 = vmul.f32 %v1050, %v1056
        %v1087 = vmul.f32 %v1051, %v1056
        %v1088 = vmul.f32 %v1052, %v1056
        %v1089 = vadd.f32 %v989, %v1057
        %v1090 = vadd.f32 %v990, %v1058
        %v1091 = vadd.f32 %v991, %v1059
        %v1092 = vadd.f32 %v992, %v1060
        %v1093 = vadd.f32 %v993, %v1061
        %v1094 = vadd.f32 %v994, %v1062
        %v1095 = vadd.f32 %v995, %v1063
        %v1096 = vadd.f32 %v996, %v1064
        %v1097 = vadd.f32 %v997, %v1065
        %v1098 = vadd.f32 %v998, %v1066
        %v1099 = vadd.f32 %v999, %v1067
        %v1100 = vadd.f32 %v1000, %v1068
        %v1101 = vadd.f32 %v1001, %v1069
        %v1102 = vadd.f32 %v1002, %v1070
        %v1103 = vadd.f32 %v1003, %v1071
        %v1104 = vadd.f32 %v1004, %v1072
        %v1105 = vadd.f32 %v1005, %v1073
        %v1106 = vadd.f32 %v1006, %v1074
        %v1107 = vadd.f32 %v1007, %v1075
        %v1108 = vadd.f32 %v1008, %v1076
        %v1109 = vadd.f32 %v1009, %v1077
        %v1110 = vadd.f32 %v1010, %v1078
        %v1111 = vadd.f32 %v1011, %v1079
        %v1112 = vadd.f32 %v1012, %v1080
        %v1113 = vadd.f32 %v1013, %v1081
        %v1114 = vadd.f32 %v1014, %v1082
        %v1115 = vadd.f32 %v1015, %v1083
        %v1116 = vadd.f32 %v1016, %v1084
        %v1117 = vadd.f32 %v1017, %v1085
        %v1118 = vadd.f32 %v1018, %v1086
        %v1119 = vadd.f32 %v1019, %v1087
        %v1120 = vadd.f32 %v1020, %v1088
        %v1121 = vld [vmem:[%s920 + $0x2] sm:$0xff]
        %v1122 = vld [vmem:[%s920 + $0xa] sm:$0xff]
        %v1123 = vld [vmem:[%s920 + $0x1a] sm:$0xff]
        %v1124 = vld [vmem:[%s920 + $0x22] sm:$0xff]
        %v1125 = vld [vmem:[%s920 + $0x32] sm:$0xff]
        %v1126 = vld [vmem:[%s920 + $0x3a] sm:$0xff]
        %v1127 = vld [vmem:[%s920 + $0x4a] sm:$0xff]
        %v1128 = vld [vmem:[%s920 + $0x52] sm:$0xff]
        %v1129 = vld [vmem:[%s920 + $0x62] sm:$0xff]
        %v1130 = vld [vmem:[%s920 + $0x6a] sm:$0xff]
        %v1131 = vld [vmem:[%s920 + $0x7a] sm:$0xff]
        %v1132 = vld [vmem:[%s920 + $0x82] sm:$0xff]
        %v1133 = vld [vmem:[%s920 + $0x92] sm:$0xff]
        %v1134 = vld [vmem:[%s920 + $0x9a] sm:$0xff]
        %v1135 = vld [vmem:[%s920 + $0xaa] sm:$0xff]
        %v1136 = vld [vmem:[%s920 + $0xb2] sm:$0xff]
        %v1137 = vld [vmem:[%s920 + $0xc2] sm:$0xff]
        %v1138 = vld [vmem:[%s920 + $0xca] sm:$0xff]
        %v1139 = vld [vmem:[%s920 + $0xda] sm:$0xff]
        %v1140 = vld [vmem:[%s920 + $0xe2] sm:$0xff]
        %v1141 = vld [vmem:[%s920 + $0xf2] sm:$0xff]
        %v1142 = vld [vmem:[%s920 + $0xfa] sm:$0xff]
        %v1143 = vld [vmem:[%s920 + $0x10a] sm:$0xff]
        %v1144 = vld [vmem:[%s920 + $0x112] sm:$0xff]
        %v1145 = vld [vmem:[%s920 + $0x122] sm:$0xff]
        %v1146 = vld [vmem:[%s920 + $0x12a] sm:$0xff]
        %v1147 = vld [vmem:[%s920 + $0x13a] sm:$0xff]
        %v1148 = vld [vmem:[%s920 + $0x142] sm:$0xff]
        %v1149 = vld [vmem:[%s920 + $0x152] sm:$0xff]
        %v1150 = vld [vmem:[%s920 + $0x15a] sm:$0xff]
        %v1151 = vld [vmem:[%s920 + $0x16a] sm:$0xff]
        %v1152 = vld [vmem:[%s920 + $0x172] sm:$0xff]
        %v1153 = vlaneseq
        %v1154 = vshrl.u32 %v1153, 7
        %v1155 = vsub.s32 0, %v1154
        %v1156 = vrot.slane %v351, %v1155
        %v1157 = vmul.f32 %v1121, %v1156
        %v1158 = vmul.f32 %v1122, %v1156
        %v1159 = vmul.f32 %v1123, %v1156
        %v1160 = vmul.f32 %v1124, %v1156
        %v1161 = vmul.f32 %v1125, %v1156
        %v1162 = vmul.f32 %v1126, %v1156
        %v1163 = vmul.f32 %v1127, %v1156
        %v1164 = vmul.f32 %v1128, %v1156
        %v1165 = vmul.f32 %v1129, %v1156
        %v1166 = vmul.f32 %v1130, %v1156
        %v1167 = vmul.f32 %v1131, %v1156
        %v1168 = vmul.f32 %v1132, %v1156
        %v1169 = vmul.f32 %v1133, %v1156
        %v1170 = vmul.f32 %v1134, %v1156
        %v1171 = vmul.f32 %v1135, %v1156
        %v1172 = vmul.f32 %v1136, %v1156
        %v1173 = vmul.f32 %v1137, %v1156
        %v1174 = vmul.f32 %v1138, %v1156
        %v1175 = vmul.f32 %v1139, %v1156
        %v1176 = vmul.f32 %v1140, %v1156
        %v1177 = vmul.f32 %v1141, %v1156
        %v1178 = vmul.f32 %v1142, %v1156
        %v1179 = vmul.f32 %v1143, %v1156
        %v1180 = vmul.f32 %v1144, %v1156
        %v1181 = vmul.f32 %v1145, %v1156
        %v1182 = vmul.f32 %v1146, %v1156
        %v1183 = vmul.f32 %v1147, %v1156
        %v1184 = vmul.f32 %v1148, %v1156
        %v1185 = vmul.f32 %v1149, %v1156
        %v1186 = vmul.f32 %v1150, %v1156
        %v1187 = vmul.f32 %v1151, %v1156
        %v1188 = vmul.f32 %v1152, %v1156
        %v1189 = vadd.f32 %v1089, %v1157
        %v1190 = vadd.f32 %v1090, %v1158
        %v1191 = vadd.f32 %v1091, %v1159
        %v1192 = vadd.f32 %v1092, %v1160
        %v1193 = vadd.f32 %v1093, %v1161
        %v1194 = vadd.f32 %v1094, %v1162
        %v1195 = vadd.f32 %v1095, %v1163
        %v1196 = vadd.f32 %v1096, %v1164
        %v1197 = vadd.f32 %v1097, %v1165
        %v1198 = vadd.f32 %v1098, %v1166
        %v1199 = vadd.f32 %v1099, %v1167
        %v1200 = vadd.f32 %v1100, %v1168
        %v1201 = vadd.f32 %v1101, %v1169
        %v1202 = vadd.f32 %v1102, %v1170
        %v1203 = vadd.f32 %v1103, %v1171
        %v1204 = vadd.f32 %v1104, %v1172
        %v1205 = vadd.f32 %v1105, %v1173
        %v1206 = vadd.f32 %v1106, %v1174
        %v1207 = vadd.f32 %v1107, %v1175
        %v1208 = vadd.f32 %v1108, %v1176
        %v1209 = vadd.f32 %v1109, %v1177
        %v1210 = vadd.f32 %v1110, %v1178
        %v1211 = vadd.f32 %v1111, %v1179
        %v1212 = vadd.f32 %v1112, %v1180
        %v1213 = vadd.f32 %v1113, %v1181
        %v1214 = vadd.f32 %v1114, %v1182
        %v1215 = vadd.f32 %v1115, %v1183
        %v1216 = vadd.f32 %v1116, %v1184
        %v1217 = vadd.f32 %v1117, %v1185
        %v1218 = vadd.f32 %v1118, %v1186
        %v1219 = vadd.f32 %v1119, %v1187
        %v1220 = vadd.f32 %v1120, %v1188
        %v1221 = vld [vmem:[%s241] sm:$0x1]
        %v1223 = vlaneseq
        %v1224 = vshrl.u32 %v1223, 7
        %v1225 = vsub.s32 0, %v1224
        %v1226 = vrot.slane %v1221, %v1225
        %v1228 = vadd.f32 %v1189, %v1226
        %v1229 = vadd.f32 %v1190, %v1226
        %v1230 = vadd.f32 %v1191, %v1226
        %v1231 = vadd.f32 %v1192, %v1226
        %v1232 = vadd.f32 %v1193, %v1226
        %v1233 = vadd.f32 %v1194, %v1226
        %v1234 = vadd.f32 %v1195, %v1226
        %v1235 = vadd.f32 %v1196, %v1226
        %v1236 = vadd.f32 %v1197, %v1226
        %v1237 = vadd.f32 %v1198, %v1226
        %v1238 = vadd.f32 %v1199, %v1226
        %v1239 = vadd.f32 %v1200, %v1226
        %v1240 = vadd.f32 %v1201, %v1226
        %v1241 = vadd.f32 %v1202, %v1226
        %v1242 = vadd.f32 %v1203, %v1226
        %v1243 = vadd.f32 %v1204, %v1226
        %v1244 = vadd.f32 %v1205, %v1226
        %v1245 = vadd.f32 %v1206, %v1226
        %v1246 = vadd.f32 %v1207, %v1226
        %v1247 = vadd.f32 %v1208, %v1226
        %v1248 = vadd.f32 %v1209, %v1226
        %v1249 = vadd.f32 %v1210, %v1226
        %v1250 = vadd.f32 %v1211, %v1226
        %v1251 = vadd.f32 %v1212, %v1226
        %v1252 = vadd.f32 %v1213, %v1226
        %v1253 = vadd.f32 %v1214, %v1226
        %v1254 = vadd.f32 %v1215, %v1226
        %v1255 = vadd.f32 %v1216, %v1226
        %v1256 = vadd.f32 %v1217, %v1226
        %v1257 = vadd.f32 %v1218, %v1226
        %v1258 = vadd.f32 %v1219, %v1226
        %v1259 = vadd.f32 %v1220, %v1226
        %1260 = vst [vmem:[%s238] sm:$0xff] %v1228
        %1261 = vst [vmem:[%s238 + $0x8] sm:$0xff] %v1229
        %1262 = vst [vmem:[%s238 + $0x10] sm:$0xff] %v1230
        %1263 = vst [vmem:[%s238 + $0x18] sm:$0xff] %v1231
        %1264 = vst [vmem:[%s238 + $0x20] sm:$0xff] %v1232
        %1265 = vst [vmem:[%s238 + $0x28] sm:$0xff] %v1233
        %1266 = vst [vmem:[%s238 + $0x30] sm:$0xff] %v1234
        %1267 = vst [vmem:[%s238 + $0x38] sm:$0xff] %v1235
        %1268 = vst [vmem:[%s238 + $0x40] sm:$0xff] %v1236
        %1269 = vst [vmem:[%s238 + $0x48] sm:$0xff] %v1237
        %1270 = vst [vmem:[%s238 + $0x50] sm:$0xff] %v1238
        %1271 = vst [vmem:[%s238 + $0x58] sm:$0xff] %v1239
        %1272 = vst [vmem:[%s238 + $0x60] sm:$0xff] %v1240
        %1273 = vst [vmem:[%s238 + $0x68] sm:$0xff] %v1241
        %1274 = vst [vmem:[%s238 + $0x70] sm:$0xff] %v1242
        %1275 = vst [vmem:[%s238 + $0x78] sm:$0xff] %v1243
        %1276 = vst [vmem:[%s238 + $0x80] sm:$0xff] %v1244
        %1277 = vst [vmem:[%s238 + $0x88] sm:$0xff] %v1245
        %1278 = vst [vmem:[%s238 + $0x90] sm:$0xff] %v1246
        %1279 = vst [vmem:[%s238 + $0x98] sm:$0xff] %v1247
        %1280 = vst [vmem:[%s238 + $0xa0] sm:$0xff] %v1248
        %1281 = vst [vmem:[%s238 + $0xa8] sm:$0xff] %v1249
        %1282 = vst [vmem:[%s238 + $0xb0] sm:$0xff] %v1250
        %1283 = vst [vmem:[%s238 + $0xb8] sm:$0xff] %v1251
        %1284 = vst [vmem:[%s238 + $0xc0] sm:$0xff] %v1252
        %1285 = vst [vmem:[%s238 + $0xc8] sm:$0xff] %v1253
        %1286 = vst [vmem:[%s238 + $0xd0] sm:$0xff] %v1254
        %1287 = vst [vmem:[%s238 + $0xd8] sm:$0xff] %v1255
        %1288 = vst [vmem:[%s238 + $0xe0] sm:$0xff] %v1256
        %1289 = vst [vmem:[%s238 + $0xe8] sm:$0xff] %v1257
        %1290 = vst [vmem:[%s238 + $0xf0] sm:$0xff] %v1258
        %1291 = vst [vmem:[%s238 + $0xf8] sm:$0xff] %v1259
        %s1292 = sand.u32 %s123, 1
        %s1293 = scalar_lea.sflag [#allocation5], %s1292
        %s1294 = sand.u32 %s123, 1
        %s1295 = smul.addr %s1294, 256
        %s1296 = scalar_lea.vmem [#allocation8], %s1295
        // Predicated region
        $region41: #{tpu_custom_call.1} parent=31 // pred_check
          %p1297 = pneg %p133
        $region42: #{tpu_custom_call.1} parent=31 // pred_check_branch
          %1299 = sbr.rel (%p1297) target = $region44
        $region43: #{tpu_custom_call.1} parent=31 // pred_region
          %s1301 = ssub.s32 4096, 4096
          %1302 = vsyncadd %s1293, %s1301
          %s1303 = smul.addr %s25, 32
          %s1304 = sadd.s32 %s26, %s1303
          %s1305 = smul.addr %s1304, 128
          %s1306 = scalar_lea.hbm %s3, %s1305
          %s1307 = sshll.u32 %s1296, 4
          %s1308 = int_to_ptr.vmem [resolvable:$true] %s1307
          %1313 = dma.vmem_to_hbm [thread:$0]  %s1308, 4096, %s1306, %s1293, 128, 128, 8
        $region44: #{tpu_custom_call.1} parent=31 // pred_fallthru
          _
      $region32: #{tpu_custom_call.1} parent=5 // pred_fallthru
        _
      %p1314 = scmp.le.s32.totalorder 2, %s16
      // Predicated region
      $region45: #{tpu_custom_call.1} parent=5 // pred_check
        %p1315 = pneg %p1314
      $region46: #{tpu_custom_call.1} parent=5 // pred_check_branch
        %1317 = sbr.rel (%p1315) target = $region48
      $region47: #{tpu_custom_call.1} parent=5 // pred_region
        %s1318 = ssub.s32 %s16, 2
        // Predicated region
        $region49: #{tpu_custom_call.1} parent=47 // pred_check
          %p1319 = pneg %p139
        $region50: #{tpu_custom_call.1} parent=47 // pred_check_branch
          %1321 = sbr.rel (%p1319) target = $region52
        $region51: #{tpu_custom_call.1} parent=47 // pred_region
          %s1322 = sand.u32 %s124, 1
          %s1323 = scalar_lea.sflag [#allocation5], %s1322
          %s1324 = sand.u32 %s124, 1
          %s1325 = smul.addr %s1324, 256
          %s1326 = scalar_lea.vmem [#allocation8], %s1325
          %1327 = dma.done %s1323, 4096
        $region52: #{tpu_custom_call.1} parent=47 // pred_fallthru
          _
      $region48: #{tpu_custom_call.1} parent=5 // pred_fallthru
        _
    $region6: #{tpu_custom_call.1} parent=1 // loop_footer
      %s20 = sadd.s32 1, %s16
    $region7: #{tpu_custom_call.1} parent=1 // loop_footer_branch
      %15 = sbr.rel target = $region3
    $region8: #{tpu_custom_call.1} parent=1 // loop_exit
      _
    %1328 = vsyncpa [#allocation4], 1
    %s1329 = scalar_lea.sflag [#allocation4], 1
    %1330 = vsyncpa %s1329, 1
    %1331 = vsyncpa [#allocation7], 1
    %1332 = vsyncpa [#allocation5], 1
    %s1333 = scalar_lea.sflag [#allocation5], 1
    %1334 = vsyncpa %s1333, 1

</llo_original>
